<compile_context>
chip_gen: v7x
topology: tpu7x:2x2x1
jax: 0.10.0
libtpu: 0.0.40
codegen_flags: <defaults>
</compile_context>

<pallas_src>
import jax
import jax.numpy as jnp
from jax.experimental import pallas as pl
from jax.experimental.pallas import tpu as pltpu


def cross_attention_kernel(q_ref, kv_ref, wq_ref, bq_ref, wkv_ref, bkv_ref,
                           wo_ref, bo_ref, o_ref):
    """One batch block per grid step.

    q_ref, kv_ref : (Bblk, C, HW) bf16 VMEM  (lane-dense: HW on lanes)
    wq_ref        : (C, C)        bf16 VMEM  (1/sqrt(C) pre-folded)
    bq_ref        : (C, 1)        f32  VMEM  (1/sqrt(C) pre-folded)
    wkv_ref       : (2C, C)       bf16 VMEM  (k rows first, then v rows)
    bkv_ref       : (2C, 1)       f32  VMEM
    wo_ref        : (C, C)        bf16 VMEM
    bo_ref        : (C, 1)        f32  VMEM
    o_ref         : (Bblk, C, HW) f32  VMEM
    """
    b_blk, C, HW = q_ref.shape
    q_chunk = 128 if (HW % 128 == 0 and HW > 128) else HW
    n_chunks = HW // q_chunk

    wq = wq_ref[...]
    wkv = wkv_ref[...]
    wo = wo_ref[...]
    bq = bq_ref[...]
    bkv = bkv_ref[...]
    bo = bo_ref[...]

    for b in range(b_blk):                     # small static batch block
        xq = q_ref[b]                          # (C, HW) bf16
        xkv = kv_ref[b]                        # (C, HW) bf16

        # ---- 1x1-conv projections as MXU matmuls (bf16 in, f32 acc) --------
        q = (jnp.dot(wq, xq, preferred_element_type=jnp.float32) + bq
             ).astype(jnp.bfloat16)                                   # (C, HW), scale folded in
        kv = jnp.dot(wkv, xkv, preferred_element_type=jnp.float32) + bkv
        k = kv[:C].astype(jnp.bfloat16)                               # (C, HW)
        v = kv[C:].astype(jnp.bfloat16)                               # (C, HW)

        # ---- attention, tiled over 128-lane query chunks --------------------
        for ci in range(n_chunks):
            q_c = q[:, ci * q_chunk:(ci + 1) * q_chunk]               # (C, qc)

            # s[p', p] = sum_c k[c, p'] * q[c, p]   (keys on sublanes,
            # queries on lanes -> PV and out-proj are standard-orientation).
            s = jax.lax.dot_general(k, q_c, (((0,), (0,)), ((), ())),
                                    preferred_element_type=jnp.float32)  # (HW, qc)

            # Numerically-stable softmax over keys (axis 0), kept in f32.
            m = jnp.max(s, axis=0, keepdims=True)                     # (1, qc)
            e = jnp.exp(s - m)                                        # (HW, qc)
            l = jnp.sum(e, axis=0, keepdims=True)                     # (1, qc)

            # Unnormalized PV, then a cheap (C, qc) rescale by 1/l (EUP).
            pv = jnp.dot(v, e.astype(jnp.bfloat16),
                         preferred_element_type=jnp.float32)          # (C, qc)
            pv = pv * pl.reciprocal(l, approx=True)

            # Output projection (standard orientation), aligned 128-lane store.
            out = jnp.dot(wo, pv.astype(jnp.bfloat16),
                          preferred_element_type=jnp.float32) + bo    # (C, qc)
            o_ref[b, :, pl.ds(ci * q_chunk, q_chunk)] = out.astype(o_ref.dtype)


def _pick_batch_block(B):
    """Largest divisor of B that still leaves >= 2 grid steps (v7x: 2 TCs)."""
    if B <= 2:
        return 1
    best = 1
    for blk in range(2, B // 2 + 1):
        if B % blk == 0:
            best = blk
    return best


def cross_attention_pallas(q_feat, kv_feat, wq, bq, wkv, bkv, wo, bo):
    """q_feat/kv_feat: (B, C, H, W); wq/wo: (C, C); wkv: (2C, C); biases 1-D."""
    B, C, H, W = q_feat.shape
    HW = H * W
    scale = 1.0 / (C ** 0.5)

    # Lane-dense layout (HW on the lane axis) + one-time bf16 casts.
    q_flat = q_feat.reshape(B, C, HW).astype(jnp.bfloat16)
    kv_flat = kv_feat.reshape(B, C, HW).astype(jnp.bfloat16)

    # Fold the 1/sqrt(C) attention scale into the q projection (zero kernel cost).
    wq_s = (wq.astype(jnp.float32) * scale).astype(jnp.bfloat16)
    bq_s = (bq.astype(jnp.float32) * scale).reshape(C, 1)
    wkv_b = wkv.astype(jnp.bfloat16)
    bkv_b = bkv.astype(jnp.float32).reshape(2 * C, 1)
    wo_b = wo.astype(jnp.bfloat16)
    bo_b = bo.astype(jnp.float32).reshape(C, 1)

    b_blk = _pick_batch_block(B)
    grid = (B // b_blk,)

    out = pl.pallas_call(
        cross_attention_kernel,
        out_shape=jax.ShapeDtypeStruct((B, C, HW), q_feat.dtype),
        grid=grid,
        in_specs=[
            pl.BlockSpec((b_blk, C, HW), lambda i: (i, 0, 0)),
            pl.BlockSpec((b_blk, C, HW), lambda i: (i, 0, 0)),
            pl.BlockSpec((C, C), lambda i: (0, 0)),       # weights: constant
            pl.BlockSpec((C, 1), lambda i: (0, 0)),       # index maps, fetched
            pl.BlockSpec((2 * C, C), lambda i: (0, 0)),   # once and reused
            pl.BlockSpec((2 * C, 1), lambda i: (0, 0)),
            pl.BlockSpec((C, C), lambda i: (0, 0)),
            pl.BlockSpec((C, 1), lambda i: (0, 0)),
        ],
        out_specs=pl.BlockSpec((b_blk, C, HW), lambda i: (i, 0, 0)),
        compiler_params=pltpu.CompilerParams(
            dimension_semantics=("parallel",)),
    )(q_flat, kv_flat, wq_s, bq_s, wkv_b, bkv_b, wo_b, bo_b)

    return out.reshape(B, C, H, W)


def cross_attention_reference(q_feat, kv_feat, wq, bq, wkv, bkv, wo, bo):
    """Pure-JAX f32 reference matching the PyTorch forward exactly."""
    B, C, H, W = q_feat.shape
    HW = H * W
    hi = jax.lax.Precision.HIGHEST

    def conv1x1(x, w, b):
        return jnp.einsum('oc,bchw->bohw', w, x,
                          precision=hi) + b[None, :, None, None]

    q = conv1x1(q_feat, wq, bq).reshape(B, C, HW).transpose(0, 2, 1)   # (B, HW, C)
    kv = conv1x1(kv_feat, wkv, bkv).reshape(B, 2, C, HW)
    k = kv[:, 0]                                                       # (B, C, HW)
    v = kv[:, 1]                                                       # (B, C, HW)
    attn = jnp.einsum('bpc,bck->bpk', q, k, precision=hi) / (C ** 0.5)
    attn = jax.nn.softmax(attn, axis=-1)
    out = jnp.einsum('bpk,bck->bpc', attn, v, precision=hi)            # (B, HW, C)
    out = out.transpose(0, 2, 1).reshape(B, C, H, W)
    return conv1x1(out, wo, bo)


if __name__ == "__main__":
    # dim=32, 16x16 spatial -> HW=256 (lane-dense), batch=2 (two parallel steps)
    B, C, H, W = 2, 32, 16, 16

    key = jax.random.PRNGKey(0)
    kq, kk, k1, k2, k3, k4, k5, k6 = jax.random.split(key, 8)

    q_feat = jax.random.normal(kq, (B, C, H, W), dtype=jnp.float32)
    kv_feat = jax.random.normal(kk, (B, C, H, W), dtype=jnp.float32)

    wq = jax.random.normal(k1, (C, C), dtype=jnp.float32) * 0.1     # Conv2d(dim, dim, 1)
    bq = jax.random.normal(k2, (C,), dtype=jnp.float32) * 0.1
    wkv = jax.random.normal(k3, (2 * C, C), dtype=jnp.float32) * 0.1  # Conv2d(dim, 2*dim, 1)
    bkv = jax.random.normal(k4, (2 * C,), dtype=jnp.float32) * 0.1
    wo = jax.random.normal(k5, (C, C), dtype=jnp.float32) * 0.1     # Conv2d(dim, dim, 1)
    bo = jax.random.normal(k6, (C,), dtype=jnp.float32) * 0.1

    fn = jax.jit(cross_attention_pallas)
    out = fn(q_feat, kv_feat, wq, bq, wkv, bkv, wo, bo)
    out = jax.block_until_ready(out)

    ref = cross_attention_reference(q_feat, kv_feat, wq, bq, wkv, bkv, wo, bo)
    assert out.shape == (B, C, H, W)
    max_diff = jnp.max(jnp.abs(out - ref))
    # Tolerance sized for bf16 MXU operands with f32 accumulation.
    assert jnp.allclose(out, ref, rtol=1e-2, atol=5e-3), (
        f"max abs diff: {max_diff}")

    print("KERNEL_OK")
</pallas_src>

<mosaic_0001>
module attributes {stable_mosaic.version = 11 : i64} {
  func.func @cross_attention_kernel(%arg0: i32, %arg1: memref<1x32x256xbf16, #tpu.memory_space<vmem>>, %arg2: memref<1x32x256xbf16, #tpu.memory_space<vmem>>, %arg3: memref<32x32xbf16, #tpu.memory_space<vmem>>, %arg4: memref<32x1xf32, #tpu.memory_space<vmem>>, %arg5: memref<64x32xbf16, #tpu.memory_space<vmem>>, %arg6: memref<64x1xf32, #tpu.memory_space<vmem>>, %arg7: memref<32x32xbf16, #tpu.memory_space<vmem>>, %arg8: memref<32x1xf32, #tpu.memory_space<vmem>>, %arg9: memref<1x32x256xf32, #tpu.memory_space<vmem>>) attributes {dimension_semantics = [#tpu.dimension_semantics<parallel>], iteration_bounds = array<i64: 2>, scalar_prefetch = 0 : i64, scratch_operands = 0 : i64, tpu.core_type = #tpu.core_type<tc>, window_params = [{transform_indices = @transform_0, window_bounds = array<i64: 1, 32, 256>}, {transform_indices = @transform_1, window_bounds = array<i64: 1, 32, 256>}, {pipeline_mode = #tpu.pipeline_mode<synchronous>, transform_indices = @transform_2, window_bounds = array<i64: 32, 32>}, {pipeline_mode = #tpu.pipeline_mode<synchronous>, transform_indices = @transform_3, window_bounds = array<i64: 32, 1>}, {pipeline_mode = #tpu.pipeline_mode<synchronous>, transform_indices = @transform_4, window_bounds = array<i64: 64, 32>}, {pipeline_mode = #tpu.pipeline_mode<synchronous>, transform_indices = @transform_5, window_bounds = array<i64: 64, 1>}, {pipeline_mode = #tpu.pipeline_mode<synchronous>, transform_indices = @transform_6, window_bounds = array<i64: 32, 32>}, {pipeline_mode = #tpu.pipeline_mode<synchronous>, transform_indices = @transform_7, window_bounds = array<i64: 32, 1>}, {transform_indices = @transform_8, window_bounds = array<i64: 1, 32, 256>}]} {
    %c0 = arith.constant 0 : index
    %c0_0 = arith.constant 0 : index
    %0 = vector.load %arg3[%c0, %c0_0] : memref<32x32xbf16, #tpu.memory_space<vmem>>, vector<32x32xbf16>
    %c0_1 = arith.constant 0 : index
    %c0_2 = arith.constant 0 : index
    %1 = vector.load %arg5[%c0_1, %c0_2] : memref<64x32xbf16, #tpu.memory_space<vmem>>, vector<64x32xbf16>
    %c0_3 = arith.constant 0 : index
    %c0_4 = arith.constant 0 : index
    %2 = vector.load %arg7[%c0_3, %c0_4] : memref<32x32xbf16, #tpu.memory_space<vmem>>, vector<32x32xbf16>
    %c0_5 = arith.constant 0 : index
    %c0_6 = arith.constant 0 : index
    %3 = vector.load %arg4[%c0_5, %c0_6] : memref<32x1xf32, #tpu.memory_space<vmem>>, vector<32x1xf32>
    %c0_7 = arith.constant 0 : index
    %c0_8 = arith.constant 0 : index
    %4 = vector.load %arg6[%c0_7, %c0_8] : memref<64x1xf32, #tpu.memory_space<vmem>>, vector<64x1xf32>
    %c0_9 = arith.constant 0 : index
    %c0_10 = arith.constant 0 : index
    %5 = vector.load %arg8[%c0_9, %c0_10] : memref<32x1xf32, #tpu.memory_space<vmem>>, vector<32x1xf32>
    %c0_11 = arith.constant 0 : index
    %c0_12 = arith.constant 0 : index
    %c0_13 = arith.constant 0 : index
    %6 = vector.load %arg1[%c0_11, %c0_12, %c0_13] : memref<1x32x256xbf16, #tpu.memory_space<vmem>>, vector<1x32x256xbf16>
    %7 = vector.shape_cast %6 : vector<1x32x256xbf16> to vector<32x256xbf16>
    %c0_14 = arith.constant 0 : index
    %c0_15 = arith.constant 0 : index
    %c0_16 = arith.constant 0 : index
    %8 = vector.load %arg2[%c0_14, %c0_15, %c0_16] : memref<1x32x256xbf16, #tpu.memory_space<vmem>>, vector<1x32x256xbf16>
    %9 = vector.shape_cast %8 : vector<1x32x256xbf16> to vector<32x256xbf16>
    %cst = arith.constant dense<0.000000e+00> : vector<32x256xf32>
    %10 = tpu.matmul %0, %7, %cst {dimension_numbers = #tpu.dot_dimension_numbers<[1], [0], [0], [1], [0, 0, 1, 1], [], []>} : vector<32x32xbf16>, vector<32x256xbf16>, vector<32x256xf32> -> vector<32x256xf32>
    %11 = vector.broadcast %3 : vector<32x1xf32> to vector<32x256xf32>
    %12 = arith.addf %10, %11 : vector<32x256xf32>
    %13 = arith.truncf %12 : vector<32x256xf32> to vector<32x256xbf16>
    %cst_17 = arith.constant dense<0.000000e+00> : vector<64x256xf32>
    %14 = tpu.matmul %1, %9, %cst_17 {dimension_numbers = #tpu.dot_dimension_numbers<[1], [0], [0], [1], [0, 0, 1, 1], [], []>} : vector<64x32xbf16>, vector<32x256xbf16>, vector<64x256xf32> -> vector<64x256xf32>
    %15 = vector.broadcast %4 : vector<64x1xf32> to vector<64x256xf32>
    %16 = arith.addf %14, %15 : vector<64x256xf32>
    %17 = vector.extract_strided_slice %16 {offsets = [0, 0], sizes = [32, 256], strides = [1, 1]} : vector<64x256xf32> to vector<32x256xf32>
    %18 = arith.truncf %17 : vector<32x256xf32> to vector<32x256xbf16>
    %19 = vector.extract_strided_slice %16 {offsets = [32, 0], sizes = [32, 256], strides = [1, 1]} : vector<64x256xf32> to vector<32x256xf32>
    %20 = arith.truncf %19 : vector<32x256xf32> to vector<32x256xbf16>
    %21 = vector.extract_strided_slice %13 {offsets = [0, 0], sizes = [32, 128], strides = [1, 1]} : vector<32x256xbf16> to vector<32x128xbf16>
    %cst_18 = arith.constant dense<0.000000e+00> : vector<256x128xf32>
    %22 = tpu.matmul %18, %21, %cst_18 {dimension_numbers = #tpu.dot_dimension_numbers<[0], [0], [1], [1], [0, 1, 1, 1], [], []>} : vector<32x256xbf16>, vector<32x128xbf16>, vector<256x128xf32> -> vector<256x128xf32>
    %cst_19 = arith.constant dense<0xFF800000> : vector<128xf32>
    %23 = vector.multi_reduction <maximumf>, %22, %cst_19 [0] : vector<256x128xf32> to vector<128xf32>
    %24 = vector.shape_cast %23 : vector<128xf32> to vector<1x128xf32>
    %25 = vector.broadcast %24 : vector<1x128xf32> to vector<256x128xf32>
    %26 = arith.subf %22, %25 : vector<256x128xf32>
    %27 = math.exp %26 : vector<256x128xf32>
    %cst_20 = arith.constant dense<0.000000e+00> : vector<128xf32>
    %28 = vector.multi_reduction <add>, %27, %cst_20 [0] : vector<256x128xf32> to vector<128xf32>
    %29 = vector.shape_cast %28 : vector<128xf32> to vector<1x128xf32>
    %30 = arith.truncf %27 : vector<256x128xf32> to vector<256x128xbf16>
    %cst_21 = arith.constant dense<0.000000e+00> : vector<32x128xf32>
    %31 = tpu.matmul %20, %30, %cst_21 {dimension_numbers = #tpu.dot_dimension_numbers<[1], [0], [0], [1], [0, 0, 1, 1], [], []>} : vector<32x256xbf16>, vector<256x128xbf16>, vector<32x128xf32> -> vector<32x128xf32>
    %32 = tpu.reciprocal %29 {approx = true} : vector<1x128xf32> -> vector<1x128xf32>
    %33 = vector.broadcast %32 : vector<1x128xf32> to vector<32x128xf32>
    %34 = arith.mulf %31, %33 : vector<32x128xf32>
    %35 = arith.truncf %34 : vector<32x128xf32> to vector<32x128xbf16>
    %cst_22 = arith.constant dense<0.000000e+00> : vector<32x128xf32>
    %36 = tpu.matmul %2, %35, %cst_22 {dimension_numbers = #tpu.dot_dimension_numbers<[1], [0], [0], [1], [0, 0, 1, 1], [], []>} : vector<32x32xbf16>, vector<32x128xbf16>, vector<32x128xf32> -> vector<32x128xf32>
    %37 = vector.broadcast %5 : vector<32x1xf32> to vector<32x128xf32>
    %38 = arith.addf %36, %37 : vector<32x128xf32>
    %c0_23 = arith.constant 0 : index
    %c0_24 = arith.constant 0 : index
    %c0_25 = arith.constant 0 : index
    %39 = vector.load %arg9[%c0_23, %c0_24, %c0_25] : memref<1x32x256xf32, #tpu.memory_space<vmem>>, vector<1x32x128xf32>
    %40 = vector.shape_cast %39 : vector<1x32x128xf32> to vector<32x128xf32>
    %41 = vector.shape_cast %38 : vector<32x128xf32> to vector<1x32x128xf32>
    tpu.vector_store %arg9[%c0_23, %c0_24, %c0_25], %41 {strides = array<i32>} : memref<1x32x256xf32, #tpu.memory_space<vmem>>, vector<1x32x128xf32>,
    %42 = vector.extract_strided_slice %13 {offsets = [0, 128], sizes = [32, 128], strides = [1, 1]} : vector<32x256xbf16> to vector<32x128xbf16>
    %cst_26 = arith.constant dense<0.000000e+00> : vector<256x128xf32>
    %43 = tpu.matmul %18, %42, %cst_26 {dimension_numbers = #tpu.dot_dimension_numbers<[0], [0], [1], [1], [0, 1, 1, 1], [], []>} : vector<32x256xbf16>, vector<32x128xbf16>, vector<256x128xf32> -> vector<256x128xf32>
    %cst_27 = arith.constant dense<0xFF800000> : vector<128xf32>
    %44 = vector.multi_reduction <maximumf>, %43, %cst_27 [0] : vector<256x128xf32> to vector<128xf32>
    %45 = vector.shape_cast %44 : vector<128xf32> to vector<1x128xf32>
    %46 = vector.broadcast %45 : vector<1x128xf32> to vector<256x128xf32>
    %47 = arith.subf %43, %46 : vector<256x128xf32>
    %48 = math.exp %47 : vector<256x128xf32>
    %cst_28 = arith.constant dense<0.000000e+00> : vector<128xf32>
    %49 = vector.multi_reduction <add>, %48, %cst_28 [0] : vector<256x128xf32> to vector<128xf32>
    %50 = vector.shape_cast %49 : vector<128xf32> to vector<1x128xf32>
    %51 = arith.truncf %48 : vector<256x128xf32> to vector<256x128xbf16>
    %cst_29 = arith.constant dense<0.000000e+00> : vector<32x128xf32>
    %52 = tpu.matmul %20, %51, %cst_29 {dimension_numbers = #tpu.dot_dimension_numbers<[1], [0], [0], [1], [0, 0, 1, 1], [], []>} : vector<32x256xbf16>, vector<256x128xbf16>, vector<32x128xf32> -> vector<32x128xf32>
    %53 = tpu.reciprocal %50 {approx = true} : vector<1x128xf32> -> vector<1x128xf32>
    %54 = vector.broadcast %53 : vector<1x128xf32> to vector<32x128xf32>
    %55 = arith.mulf %52, %54 : vector<32x128xf32>
    %56 = arith.truncf %55 : vector<32x128xf32> to vector<32x128xbf16>
    %cst_30 = arith.constant dense<0.000000e+00> : vector<32x128xf32>
    %57 = tpu.matmul %2, %56, %cst_30 {dimension_numbers = #tpu.dot_dimension_numbers<[1], [0], [0], [1], [0, 0, 1, 1], [], []>} : vector<32x32xbf16>, vector<32x128xbf16>, vector<32x128xf32> -> vector<32x128xf32>
    %58 = vector.broadcast %5 : vector<32x1xf32> to vector<32x128xf32>
    %59 = arith.addf %57, %58 : vector<32x128xf32>
    %c0_31 = arith.constant 0 : index
    %c0_32 = arith.constant 0 : index
    %c128 = arith.constant 128 : index
    %60 = vector.load %arg9[%c0_31, %c0_32, %c128] : memref<1x32x256xf32, #tpu.memory_space<vmem>>, vector<1x32x128xf32>
    %61 = vector.shape_cast %60 : vector<1x32x128xf32> to vector<32x128xf32>
    %62 = vector.shape_cast %59 : vector<32x128xf32> to vector<1x32x128xf32>
    tpu.vector_store %arg9[%c0_31, %c0_32, %c128], %62 {strides = array<i32>} : memref<1x32x256xf32, #tpu.memory_space<vmem>>, vector<1x32x128xf32>,
    return
  }
  func.func @transform_0(%arg0: i32) -> (i32, i32, i32) {
    %c0_i32 = arith.constant 0 : i32
    %c0_i32_0 = arith.constant 0 : i32
    %c0_i32_1 = arith.constant 0 : i32
    return %arg0, %c0_i32, %c0_i32_0 : i32, i32, i32
  }
  func.func @transform_1(%arg0: i32) -> (i32, i32, i32) {
    %c0_i32 = arith.constant 0 : i32
    %c0_i32_0 = arith.constant 0 : i32
    %c0_i32_1 = arith.constant 0 : i32
    return %arg0, %c0_i32, %c0_i32_0 : i32, i32, i32
  }
  func.func @transform_2(%arg0: i32) -> (i32, i32) {
    %c0_i32 = arith.constant 0 : i32
    %c0_i32_0 = arith.constant 0 : i32
    %c0_i32_1 = arith.constant 0 : i32
    return %c0_i32, %c0_i32_0 : i32, i32
  }
  func.func @transform_3(%arg0: i32) -> (i32, i32) {
    %c0_i32 = arith.constant 0 : i32
    %c0_i32_0 = arith.constant 0 : i32
    %c0_i32_1 = arith.constant 0 : i32
    return %c0_i32, %c0_i32_0 : i32, i32
  }
  func.func @transform_4(%arg0: i32) -> (i32, i32) {
    %c0_i32 = arith.constant 0 : i32
    %c0_i32_0 = arith.constant 0 : i32
    %c0_i32_1 = arith.constant 0 : i32
    return %c0_i32, %c0_i32_0 : i32, i32
  }
  func.func @transform_5(%arg0: i32) -> (i32, i32) {
    %c0_i32 = arith.constant 0 : i32
    %c0_i32_0 = arith.constant 0 : i32
    %c0_i32_1 = arith.constant 0 : i32
    return %c0_i32, %c0_i32_0 : i32, i32
  }
  func.func @transform_6(%arg0: i32) -> (i32, i32) {
    %c0_i32 = arith.constant 0 : i32
    %c0_i32_0 = arith.constant 0 : i32
    %c0_i32_1 = arith.constant 0 : i32
    return %c0_i32, %c0_i32_0 : i32, i32
  }
  func.func @transform_7(%arg0: i32) -> (i32, i32) {
    %c0_i32 = arith.constant 0 : i32
    %c0_i32_0 = arith.constant 0 : i32
    %c0_i32_1 = arith.constant 0 : i32
    return %c0_i32, %c0_i32_0 : i32, i32
  }
  func.func @transform_8(%arg0: i32) -> (i32, i32, i32) {
    %c0_i32 = arith.constant 0 : i32
    %c0_i32_0 = arith.constant 0 : i32
    %c0_i32_1 = arith.constant 0 : i32
    return %arg0, %c0_i32, %c0_i32_0 : i32, i32, i32
  }
}

</mosaic_0001>

<llo_original>
// kernel: cross_attention_pallas.1
$region0: #{cross_attention_pallas.1}
  #allocation0 [shape = 'u32[]', space=smem, size = 0x4, offset = 0x4, fixed_abs, tag = 'smem constant byte address 0x4 - core index']
  #allocation1 [shape = 'u32[144,128]{1,0:T(1,128)}', space=vmem, size = 0x12000, scoped, tag = 'internal scratch']
  %s0 = inlined_call_operand.vmem [shape: bf16[2,32,256], index: 0, kind: input, shape index: {}]
  %s1 = inlined_call_operand.vmem [shape: bf16[2,32,256], index: 1, kind: input, shape index: {}]
  %s2 = inlined_call_operand.vmem [shape: bf16[32,32], index: 2, kind: input, shape index: {}]
  %s3 = inlined_call_operand.vmem [shape: f32[32,1], index: 3, kind: input, shape index: {}]
  %s4 = inlined_call_operand.vmem [shape: bf16[64,32], index: 4, kind: input, shape index: {}]
  %s5 = inlined_call_operand.vmem [shape: f32[64,1], index: 5, kind: input, shape index: {}]
  %s6 = inlined_call_operand.vmem [shape: bf16[32,32], index: 6, kind: input, shape index: {}]
  %s7 = inlined_call_operand.vmem [shape: f32[32,1], index: 7, kind: input, shape index: {}]
  %s8 = inlined_call_operand.vmem [shape: f32[2,32,256], index: 8, kind: output, shape index: {}]
  %s9 = sld [smem:[#allocation0]]
  $region65: #{cross_attention_pallas.1} parent=0
    _
  %s11 = ssub.s32 1, %s9
  %s12 = scalar_select 0, %s11, %s9
  loop: start=0, step=1, limit=4
  $region2: #{cross_attention_pallas.1} parent=0 // loop_pre_header
    _
  $region3: #{cross_attention_pallas.1} parent=0 // loop_header
    %s14 = sphi 0, %s18
    %p15 = scmp.ge.s32.totalorder %s14, 4
    %s24 = sphi 0, %s26
    %s27 = sphi 0, %s24
    %s28 = sphi 0, %s27
    %s44 = sphi 0, %s28
    %s50 = sphi 0, %s52
    %s53 = sphi 0, %s50
    %s54 = sphi 0, %s53
    %s70 = sphi 0, %s54
    %s74 = sphi 0, %s74
    %s76 = sphi 0, %s74
    %s77 = sphi 0, %s76
    %s91 = sphi 0, %s77
    %s95 = sphi 0, %s95
    %s97 = sphi 0, %s95
    %s98 = sphi 0, %s97
    %s112 = sphi 0, %s98
    %s116 = sphi 0, %s116
    %s118 = sphi 0, %s116
    %s119 = sphi 0, %s118
    %s133 = sphi 0, %s119
    %s137 = sphi 0, %s137
    %s139 = sphi 0, %s137
    %s140 = sphi 0, %s139
    %s154 = sphi 0, %s140
    %s158 = sphi 0, %s158
    %s160 = sphi 0, %s158
    %s161 = sphi 0, %s160
    %s175 = sphi 0, %s161
    %s179 = sphi 0, %s179
    %s181 = sphi 0, %s179
    %s182 = sphi 0, %s181
    %s196 = sphi 0, %s182
    %s202 = sphi 0, %s204
    %s205 = sphi 0, %s202
    %s206 = sphi 0, %s205
    %s222 = sphi 0, %s206
  $region4: #{cross_attention_pallas.1} parent=0 // loop_header_branch
    %17 = sbr.rel (%p15) target = $region8
  $region5: #{cross_attention_pallas.1} parent=0 // loop_body
    %s19 = ssub.s32 %s14, 1
    %s20 = ssub.s32 %s14, 2
    %s21 = sadd.s32 %s14, 1
    %s22 = ssub.s32 %s14, %s21
    %p23 = scmp.eq.s32.totalorder %s22, 0
    %s25 = sadd.s32 %s24, 1
    %s26 = scalar_select %p23, %s24, %s25
    %p29 = pneg %p23
    %p30 = scmp.eq.s32.totalorder %s14, 1
    %p31 = por %p29, %p30
    %p32 = scmp.ne.s32.totalorder %s24, %s27
    %p33 = scmp.eq.s32.totalorder %s14, 0
    %p34 = por %p32, %p33
    %p35 = scmp.ne.s32.totalorder %s24, %s27
    %p36 = scmp.eq.s32.totalorder %s19, 1
    %p37 = por %p35, %p36
    %p38 = scmp.ne.s32.totalorder %s27, %s28
    %p39 = scmp.eq.s32.totalorder %s19, 0
    %p40 = por %p38, %p39
    %p41 = scmp.ne.s32.totalorder %s27, %s28
    %p42 = scmp.eq.s32.totalorder %s20, 1
    %p43 = por %p41, %p42
    %p45 = scmp.ne.s32.totalorder %s28, %s44
    %p46 = scmp.eq.s32.totalorder %s20, 0
    %p47 = por %p45, %p46
    %s48 = ssub.s32 %s14, %s21
    %p49 = scmp.eq.s32.totalorder %s48, 0
    %s51 = sadd.s32 %s50, 1
    %s52 = scalar_select %p49, %s50, %s51
    %p55 = pneg %p49
    %p56 = scmp.eq.s32.totalorder %s14, 1
    %p57 = por %p55, %p56
    %p58 = scmp.ne.s32.totalorder %s50, %s53
    %p59 = scmp.eq.s32.totalorder %s14, 0
    %p60 = por %p58, %p59
    %p61 = scmp.ne.s32.totalorder %s50, %s53
    %p62 = scmp.eq.s32.totalorder %s19, 1
    %p63 = por %p61, %p62
    %p64 = scmp.ne.s32.totalorder %s53, %s54
    %p65 = scmp.eq.s32.totalorder %s19, 0
    %p66 = por %p64, %p65
    %p67 = scmp.ne.s32.totalorder %s53, %s54
    %p68 = scmp.eq.s32.totalorder %s20, 1
    %p69 = por %p67, %p68
    %p71 = scmp.ne.s32.totalorder %s54, %s70
    %p72 = scmp.eq.s32.totalorder %s20, 0
    %p73 = por %p71, %p72
    %s75 = sadd.s32 %s74, 1
    %p78 = scmp.eq.s32.totalorder %s14, 1
    %p79 = scmp.ne.s32.totalorder %s74, %s76
    %p80 = scmp.eq.s32.totalorder %s14, 0
    %p81 = por %p79, %p80
    %p82 = scmp.ne.s32.totalorder %s74, %s76
    %p83 = scmp.eq.s32.totalorder %s19, 1
    %p84 = por %p82, %p83
    %p85 = scmp.ne.s32.totalorder %s76, %s77
    %p86 = scmp.eq.s32.totalorder %s19, 0
    %p87 = por %p85, %p86
    %p88 = scmp.ne.s32.totalorder %s76, %s77
    %p89 = scmp.eq.s32.totalorder %s20, 1
    %p90 = por %p88, %p89
    %p92 = scmp.ne.s32.totalorder %s77, %s91
    %p93 = scmp.eq.s32.totalorder %s20, 0
    %p94 = por %p92, %p93
    %s96 = sadd.s32 %s95, 1
    %p99 = scmp.eq.s32.totalorder %s14, 1
    %p100 = scmp.ne.s32.totalorder %s95, %s97
    %p101 = scmp.eq.s32.totalorder %s14, 0
    %p102 = por %p100, %p101
    %p103 = scmp.ne.s32.totalorder %s95, %s97
    %p104 = scmp.eq.s32.totalorder %s19, 1
    %p105 = por %p103, %p104
    %p106 = scmp.ne.s32.totalorder %s97, %s98
    %p107 = scmp.eq.s32.totalorder %s19, 0
    %p108 = por %p106, %p107
    %p109 = scmp.ne.s32.totalorder %s97, %s98
    %p110 = scmp.eq.s32.totalorder %s20, 1
    %p111 = por %p109, %p110
    %p113 = scmp.ne.s32.totalorder %s98, %s112
    %p114 = scmp.eq.s32.totalorder %s20, 0
    %p115 = por %p113, %p114
    %s117 = sadd.s32 %s116, 1
    %p120 = scmp.eq.s32.totalorder %s14, 1
    %p121 = scmp.ne.s32.totalorder %s116, %s118
    %p122 = scmp.eq.s32.totalorder %s14, 0
    %p123 = por %p121, %p122
    %p124 = scmp.ne.s32.totalorder %s116, %s118
    %p125 = scmp.eq.s32.totalorder %s19, 1
    %p126 = por %p124, %p125
    %p127 = scmp.ne.s32.totalorder %s118, %s119
    %p128 = scmp.eq.s32.totalorder %s19, 0
    %p129 = por %p127, %p128
    %p130 = scmp.ne.s32.totalorder %s118, %s119
    %p131 = scmp.eq.s32.totalorder %s20, 1
    %p132 = por %p130, %p131
    %p134 = scmp.ne.s32.totalorder %s119, %s133
    %p135 = scmp.eq.s32.totalorder %s20, 0
    %p136 = por %p134, %p135
    %s138 = sadd.s32 %s137, 1
    %p141 = scmp.eq.s32.totalorder %s14, 1
    %p142 = scmp.ne.s32.totalorder %s137, %s139
    %p143 = scmp.eq.s32.totalorder %s14, 0
    %p144 = por %p142, %p143
    %p145 = scmp.ne.s32.totalorder %s137, %s139
    %p146 = scmp.eq.s32.totalorder %s19, 1
    %p147 = por %p145, %p146
    %p148 = scmp.ne.s32.totalorder %s139, %s140
    %p149 = scmp.eq.s32.totalorder %s19, 0
    %p150 = por %p148, %p149
    %p151 = scmp.ne.s32.totalorder %s139, %s140
    %p152 = scmp.eq.s32.totalorder %s20, 1
    %p153 = por %p151, %p152
    %p155 = scmp.ne.s32.totalorder %s140, %s154
    %p156 = scmp.eq.s32.totalorder %s20, 0
    %p157 = por %p155, %p156
    %s159 = sadd.s32 %s158, 1
    %p162 = scmp.eq.s32.totalorder %s14, 1
    %p163 = scmp.ne.s32.totalorder %s158, %s160
    %p164 = scmp.eq.s32.totalorder %s14, 0
    %p165 = por %p163, %p164
    %p166 = scmp.ne.s32.totalorder %s158, %s160
    %p167 = scmp.eq.s32.totalorder %s19, 1
    %p168 = por %p166, %p167
    %p169 = scmp.ne.s32.totalorder %s160, %s161
    %p170 = scmp.eq.s32.totalorder %s19, 0
    %p171 = por %p169, %p170
    %p172 = scmp.ne.s32.totalorder %s160, %s161
    %p173 = scmp.eq.s32.totalorder %s20, 1
    %p174 = por %p172, %p173
    %p176 = scmp.ne.s32.totalorder %s161, %s175
    %p177 = scmp.eq.s32.totalorder %s20, 0
    %p178 = por %p176, %p177
    %s180 = sadd.s32 %s179, 1
    %p183 = scmp.eq.s32.totalorder %s14, 1
    %p184 = scmp.ne.s32.totalorder %s179, %s181
    %p185 = scmp.eq.s32.totalorder %s14, 0
    %p186 = por %p184, %p185
    %p187 = scmp.ne.s32.totalorder %s179, %s181
    %p188 = scmp.eq.s32.totalorder %s19, 1
    %p189 = por %p187, %p188
    %p190 = scmp.ne.s32.totalorder %s181, %s182
    %p191 = scmp.eq.s32.totalorder %s19, 0
    %p192 = por %p190, %p191
    %p193 = scmp.ne.s32.totalorder %s181, %s182
    %p194 = scmp.eq.s32.totalorder %s20, 1
    %p195 = por %p193, %p194
    %p197 = scmp.ne.s32.totalorder %s182, %s196
    %p198 = scmp.eq.s32.totalorder %s20, 0
    %p199 = por %p197, %p198
    %s200 = ssub.s32 %s14, %s21
    %p201 = scmp.eq.s32.totalorder %s200, 0
    %s203 = sadd.s32 %s202, 1
    %s204 = scalar_select %p201, %s202, %s203
    %p207 = pneg %p201
    %p208 = scmp.eq.s32.totalorder %s14, 1
    %p209 = por %p207, %p208
    %p210 = scmp.ne.s32.totalorder %s202, %s205
    %p211 = scmp.eq.s32.totalorder %s14, 0
    %p212 = por %p210, %p211
    %p213 = scmp.ne.s32.totalorder %s202, %s205
    %p214 = scmp.eq.s32.totalorder %s19, 1
    %p215 = por %p213, %p214
    %p216 = scmp.ne.s32.totalorder %s205, %s206
    %p217 = scmp.eq.s32.totalorder %s19, 0
    %p218 = por %p216, %p217
    %p219 = scmp.ne.s32.totalorder %s205, %s206
    %p220 = scmp.eq.s32.totalorder %s20, 1
    %p221 = por %p219, %p220
    %p223 = scmp.ne.s32.totalorder %s206, %s222
    %p224 = scmp.eq.s32.totalorder %s20, 0
    %p225 = por %p223, %p224
    %p226 = scmp.le.s32.totalorder 1, %s14
    %p227 = scmp.lt.s32.totalorder %s14, 3
    %p228 = pnand %p226, %p227
    %p229 = pneg %p228
    // Predicated region
    $region9: #{cross_attention_pallas.1} parent=5 // pred_check
      _
    $region10: #{cross_attention_pallas.1} parent=5 // pred_check_branch
      %231 = sbr.rel (%p228) target = $region12
    $region11: #{cross_attention_pallas.1} parent=5 // pred_region
      %s232 = ssub.s32 %s14, 1
      // Predicated region
      $region13: #{cross_attention_pallas.1} parent=11 // pred_check
        %p233 = pneg %p87
      $region14: #{cross_attention_pallas.1} parent=11 // pred_check_branch
        %235 = sbr.rel (%p233) target = $region16
      $region15: #{cross_attention_pallas.1} parent=11 // pred_region
        _
      $region16: #{cross_attention_pallas.1} parent=11 // pred_fallthru
        _
      // Predicated region
      $region17: #{cross_attention_pallas.1} parent=11 // pred_check
        %p236 = pneg %p108
      $region18: #{cross_attention_pallas.1} parent=11 // pred_check_branch
        %238 = sbr.rel (%p236) target = $region20
      $region19: #{cross_attention_pallas.1} parent=11 // pred_region
        _
      $region20: #{cross_attention_pallas.1} parent=11 // pred_fallthru
        _
      // Predicated region
      $region21: #{cross_attention_pallas.1} parent=11 // pred_check
        %p239 = pneg %p129
      $region22: #{cross_attention_pallas.1} parent=11 // pred_check_branch
        %241 = sbr.rel (%p239) target = $region24
      $region23: #{cross_attention_pallas.1} parent=11 // pred_region
        _
      $region24: #{cross_attention_pallas.1} parent=11 // pred_fallthru
        _
      // Predicated region
      $region25: #{cross_attention_pallas.1} parent=11 // pred_check
        %p242 = pneg %p150
      $region26: #{cross_attention_pallas.1} parent=11 // pred_check_branch
        %244 = sbr.rel (%p242) target = $region28
      $region27: #{cross_attention_pallas.1} parent=11 // pred_region
        _
      $region28: #{cross_attention_pallas.1} parent=11 // pred_fallthru
        _
      // Predicated region
      $region29: #{cross_attention_pallas.1} parent=11 // pred_check
        %p245 = pneg %p171
      $region30: #{cross_attention_pallas.1} parent=11 // pred_check_branch
        %247 = sbr.rel (%p245) target = $region32
      $region31: #{cross_attention_pallas.1} parent=11 // pred_region
        _
      $region32: #{cross_attention_pallas.1} parent=11 // pred_fallthru
        _
      // Predicated region
      $region33: #{cross_attention_pallas.1} parent=11 // pred_check
        %p248 = pneg %p192
      $region34: #{cross_attention_pallas.1} parent=11 // pred_check_branch
        %250 = sbr.rel (%p248) target = $region36
      $region35: #{cross_attention_pallas.1} parent=11 // pred_region
        _
      $region36: #{cross_attention_pallas.1} parent=11 // pred_fallthru
        _
    $region12: #{cross_attention_pallas.1} parent=5 // pred_fallthru
      _
    %p251 = scmp.lt.s32.totalorder %s14, 2
    // Predicated region
    $region37: #{cross_attention_pallas.1} parent=5 // pred_check
      %p252 = pneg %p251
    $region38: #{cross_attention_pallas.1} parent=5 // pred_check_branch
      %254 = sbr.rel (%p252) target = $region40
    $region39: #{cross_attention_pallas.1} parent=5 // pred_region
      // Predicated region
      $region41: #{cross_attention_pallas.1} parent=39 // pred_check
        %p255 = pneg %p34
      $region42: #{cross_attention_pallas.1} parent=39 // pred_check_branch
        %257 = sbr.rel (%p255) target = $region44
      $region43: #{cross_attention_pallas.1} parent=39 // pred_region
        %p258 = scmp.lt.s32.totalorder %s14, 1
        %s259 = scalar_select %p258, %s14, 1
        %s260 = smul.addr %s259, 8
        %s261 = smul.addr %s260, 4
        %s262 = scalar_lea.vmem %s0, %s261
      $region44: #{cross_attention_pallas.1} parent=39 // pred_fallthru
        _
      // Predicated region
      $region45: #{cross_attention_pallas.1} parent=39 // pred_check
        %p263 = pneg %p60
      $region46: #{cross_attention_pallas.1} parent=39 // pred_check_branch
        %265 = sbr.rel (%p263) target = $region48
      $region47: #{cross_attention_pallas.1} parent=39 // pred_region
        %p266 = scmp.lt.s32.totalorder %s14, 1
        %s267 = scalar_select %p266, %s14, 1
        %s268 = smul.addr %s267, 8
        %s269 = smul.addr %s268, 4
        %s270 = scalar_lea.vmem %s1, %s269
      $region48: #{cross_attention_pallas.1} parent=39 // pred_fallthru
        _
    $region40: #{cross_attention_pallas.1} parent=5 // pred_fallthru
      _
    %p271 = scmp.le.s32.totalorder 1, %s14
    %p272 = scmp.lt.s32.totalorder %s14, 3
    %p273 = pnand %p271, %p272
    %p274 = pneg %p273
    // Predicated region
    $region49: #{cross_attention_pallas.1} parent=5 // pred_check
      _
    $region50: #{cross_attention_pallas.1} parent=5 // pred_check_branch
      %276 = sbr.rel (%p273) target = $region52
    $region51: #{cross_attention_pallas.1} parent=5 // pred_region
      %s277 = ssub.s32 %s14, 1
      %p278 = scmp.lt.s32.totalorder %s19, 1
      %s279 = scalar_select %p278, %s19, 1
      %s280 = smul.addr %s279, 8
      %s281 = smul.addr %s280, 4
      %s282 = scalar_lea.vmem %s0, %s281
      %p283 = pneg %p40
      %p284 = pneg %p37
      %p285 = scmp.lt.s32.totalorder %s19, 1
      %s286 = scalar_select %p285, %s19, 1
      %s287 = smul.addr %s286, 8
      %s288 = smul.addr %s287, 4
      %s289 = scalar_lea.vmem %s1, %s288
      %p290 = pneg %p66
      %p291 = pneg %p63
      %p292 = pneg %p87
      %p293 = pneg %p84
      %p294 = pneg %p108
      %p295 = pneg %p105
      %p296 = pneg %p129
      %p297 = pneg %p126
      %p298 = pneg %p150
      %p299 = pneg %p147
      %p300 = pneg %p171
      %p301 = pneg %p168
      %p302 = pneg %p192
      %p303 = pneg %p189
      %p304 = pneg %p218
      %p305 = pneg %p215
      %p306 = scmp.lt.s32.totalorder %s19, 1
      %s307 = scalar_select %p306, %s19, 1
      %s308 = smul.addr %s307, 8
      %s309 = smul.addr %s308, 8
      %s310 = scalar_lea.vmem %s8, %s309
      %p311 = scmp.lt.s32.totalorder %s19, 1
      %s312 = scalar_select %p311, %s19, 1
      %s313 = smul.addr %s312, 8
      %s314 = smul.addr %s313, 4
      %s315 = scalar_lea.vmem %s0, %s314
      %p316 = scmp.lt.s32.totalorder %s19, 1
      %s317 = scalar_select %p316, %s19, 1
      %s318 = smul.addr %s317, 8
      %s319 = smul.addr %s318, 4
      %s320 = scalar_lea.vmem %s1, %s319
      %p321 = scmp.lt.s32.totalorder %s19, 1
      %s322 = scalar_select %p321, %s19, 1
      %s323 = smul.addr %s322, 8
      %s324 = smul.addr %s323, 8
      %s325 = scalar_lea.vmem %s8, %s324
      %v327 = vld [vmem:[%s2] sm:$0xf]
      %v328 = vld [vmem:[%s2 + $0x4] sm:$0xf]
      %v329 = vld [vmem:[%s2 + $0x8] sm:$0xf]
      %v330 = vld [vmem:[%s2 + $0xc] sm:$0xf]
      %v331 = vld [vmem:[%s4] sm:$0xf]
      %v332 = vld [vmem:[%s4 + $0x4] sm:$0xf]
      %v333 = vld [vmem:[%s4 + $0x8] sm:$0xf]
      %v334 = vld [vmem:[%s4 + $0xc] sm:$0xf]
      %v335 = vld [vmem:[%s4 + $0x10] sm:$0xf]
      %v336 = vld [vmem:[%s4 + $0x14] sm:$0xf]
      %v337 = vld [vmem:[%s4 + $0x18] sm:$0xf]
      %v338 = vld [vmem:[%s4 + $0x1c] sm:$0xf]
      %v339 = vld [vmem:[%s6] sm:$0xf]
      %v340 = vld [vmem:[%s6 + $0x4] sm:$0xf]
      %v341 = vld [vmem:[%s6 + $0x8] sm:$0xf]
      %v342 = vld [vmem:[%s6 + $0xc] sm:$0xf]
      %v343 = vld [vmem:[%s3] sm:$0xff]
      %v344 = vld [vmem:[%s3 + $0x8] sm:$0xff]
      %v345 = vld [vmem:[%s3 + $0x10] sm:$0xff]
      %v346 = vld [vmem:[%s3 + $0x18] sm:$0xff]
      %v347 = vld [vmem:[%s5] sm:$0xff]
      %v348 = vld [vmem:[%s5 + $0x8] sm:$0xff]
      %v349 = vld [vmem:[%s5 + $0x10] sm:$0xff]
      %v350 = vld [vmem:[%s5 + $0x18] sm:$0xff]
      %v351 = vld [vmem:[%s5 + $0x20] sm:$0xff]
      %v352 = vld [vmem:[%s5 + $0x28] sm:$0xff]
      %v353 = vld [vmem:[%s5 + $0x30] sm:$0xff]
      %v354 = vld [vmem:[%s5 + $0x38] sm:$0xff]
      %v355 = vld [vmem:[%s7] sm:$0xff]
      %v356 = vld [vmem:[%s7 + $0x8] sm:$0xff]
      %v357 = vld [vmem:[%s7 + $0x10] sm:$0xff]
      %v358 = vld [vmem:[%s7 + $0x18] sm:$0xff]
      %v359 = vld [vmem:[%s315] sm:$0xff]
      %v360 = vld [vmem:[%s315 + $0x8] sm:$0xff]
      %v361 = vld [vmem:[%s315 + $0x10] sm:$0xff]
      %v362 = vld [vmem:[%s315 + $0x18] sm:$0xff]
      %v363 = vld [vmem:[%s320] sm:$0xff]
      %v364 = vld [vmem:[%s320 + $0x8] sm:$0xff]
      %v365 = vld [vmem:[%s320 + $0x10] sm:$0xff]
      %v366 = vld [vmem:[%s320 + $0x18] sm:$0xff]
      %368 = vset.pattern.permute.xlu0 0
      %369 = vperm.xlu0 %368, %v343
      %v370 = vpop.permute.xlu0 %369
      %373 = vset.pattern.permute.xlu0 0
      %374 = vperm.xlu0 %373, %v344
      %v375 = vpop.permute.xlu0 %374
      %378 = vset.pattern.permute.xlu0 0
      %379 = vperm.xlu0 %378, %v345
      %v380 = vpop.permute.xlu0 %379
      %383 = vset.pattern.permute.xlu0 0
      %384 = vperm.xlu0 %383, %v346
      %v385 = vpop.permute.xlu0 %384
      %v391 = vunpack.c.l.b16 %v327
      %v392 = vunpack.c.l.b16 %v328
      %v393 = vunpack.c.l.b16 %v329
      %v394 = vunpack.c.l.b16 %v330
      %v395 = vpack.c.b16 %v392, %v391
      %v396 = vpack.c.b16 %v394, %v393
      %v401 = vunpack.c.l.b16 %v359
      %v402 = vunpack.c.h.b16 %v359
      %v403 = vunpack.c.l.b16 %v360
      %v404 = vunpack.c.h.b16 %v360
      %v405 = vunpack.c.l.b16 %v361
      %v406 = vunpack.c.h.b16 %v361
      %v407 = vunpack.c.l.b16 %v362
      %v408 = vunpack.c.h.b16 %v362
      %v409 = vpack.c.b16 %v403, %v401
      %v410 = vpack.c.b16 %v404, %v402
      %v411 = vpack.c.b16 %v407, %v405
      %v412 = vpack.c.b16 %v408, %v406
      %vm417 = vcmask 261120
      %v419 = vsel %vm417, %v395, 0
      %v422 = vsel %vm417, %v396, 0
      %424 = vmatprep.subr.bf16.mxu0 %v410
      %425 = vmatpush1.bf16.msra.mxu0 %v409
      %426 = vmatprep.subr.bf16.mxu0 %v412
      %427 = vmatpush1.bf16.msra.mxu0 %v411
      %428 = vmatprep.subr.bf16.mxu0 0
      %429 = vmatpush1.bf16.msra.mxu0 0
      %430 = vmatprep.subr.bf16.mxu0 0
      %431 = vmatpush1.bf16.msra.mxu0 0
      %432 = vmatprep.subr.bf16.mxu0 0
      %433 = vmatpush1.bf16.msra.mxu0 0
      %434 = vmatprep.subr.bf16.mxu0 0
      %435 = vmatpush1.bf16.msra.mxu0 0
      %436 = vmatprep.subr.bf16.mxu0 0
      %437 = vmatpush1.bf16.msra.mxu0 0
      %438 = vmatprep.subr.bf16.mxu0 0
      %439 = vmatpush1.bf16.msra.mxu0 0
      %440 = vmatprep.subr.bf16.mxu0 0
      %441 = vmatpush1.bf16.msra.mxu0 0
      %442 = vmatprep.subr.bf16.mxu0 0
      %443 = vmatpush1.bf16.msra.mxu0 0
      %444 = vmatprep.subr.bf16.mxu0 0
      %445 = vmatpush1.bf16.msra.mxu0 0
      %446 = vmatprep.subr.bf16.mxu0 0
      %447 = vmatpush1.bf16.msra.mxu0 0
      %448 = vmatprep.subr.bf16.mxu0 0
      %449 = vmatpush1.bf16.msra.mxu0 0
      %450 = vmatprep.subr.bf16.mxu0 0
      %451 = vmatpush1.bf16.msra.mxu0 0
      %452 = vmatprep.subr.bf16.mxu0 0
      %453 = vmatpush1.bf16.msra.mxu0 0
      %454 = vmatprep.subr.bf16.mxu0 0
      %455 = vmatpush1.bf16.msra.mxu0 0
      %456 = vmatprep.mubr.bf16.mxu0 0
      %457 = vmatmul.mubr.bf16.gmra.mrb[0].mxu0 %v419
      %v458 = vpop.f32.mrb[0].mxu0
      %v459 = vadd.f32 %v370, %v458
      %v460 = vpop.f32.mrb[0].mxu0
      %v461 = vadd.f32 %v370, %v460
      %v462 = vpop.f32.mrb[0].mxu0
      %v463 = vadd.f32 %v375, %v462
      %v464 = vpop.f32.mrb[0].mxu0
      %v465 = vadd.f32 %v375, %v464
      %466 = vmatprep.mubr.bf16.mxu0 0
      %467 = vmatmul.mubr.bf16.gmra.mrb[0].mxu0 %v422
      %v468 = vpop.f32.mrb[0].mxu0
      %v469 = vadd.f32 %v380, %v468
      %v470 = vpop.f32.mrb[0].mxu0
      %v471 = vadd.f32 %v380, %v470
      %v472 = vpop.f32.mrb[0].mxu0
      %v473 = vadd.f32 %v385, %v472
      %v474 = vpop.f32.mrb[0].mxu0
      %v475 = vadd.f32 %v385, %v474
      %476 = vdwg.mxu0
      %v477 = vpack.c.bf16 %v463, %v459
      %v478 = vpack.c.bf16 %v465, %v461
      %v479 = vpack.c.bf16 %v473, %v469
      %v480 = vpack.c.bf16 %v475, %v471
      %482 = vset.pattern.permute.xlu0 0
      %483 = vperm.xlu0 %482, %v347
      %v484 = vpop.permute.xlu0 %483
      %487 = vset.pattern.permute.xlu0 0
      %488 = vperm.xlu0 %487, %v348
      %v489 = vpop.permute.xlu0 %488
      %492 = vset.pattern.permute.xlu0 0
      %493 = vperm.xlu0 %492, %v349
      %v494 = vpop.permute.xlu0 %493
      %497 = vset.pattern.permute.xlu0 0
      %498 = vperm.xlu0 %497, %v350
      %v499 = vpop.permute.xlu0 %498
      %502 = vset.pattern.permute.xlu0 0
      %503 = vperm.xlu0 %502, %v351
      %v504 = vpop.permute.xlu0 %503
      %507 = vset.pattern.permute.xlu0 0
      %508 = vperm.xlu0 %507, %v352
      %v509 = vpop.permute.xlu0 %508
      %512 = vset.pattern.permute.xlu0 0
      %513 = vperm.xlu0 %512, %v353
      %v514 = vpop.permute.xlu0 %513
      %517 = vset.pattern.permute.xlu0 0
      %518 = vperm.xlu0 %517, %v354
      %v519 = vpop.permute.xlu0 %518
      %v529 = vunpack.c.l.b16 %v331
      %v530 = vunpack.c.l.b16 %v332
      %v531 = vunpack.c.l.b16 %v333
      %v532 = vunpack.c.l.b16 %v334
      %v533 = vunpack.c.l.b16 %v335
      %v534 = vunpack.c.l.b16 %v336
      %v535 = vunpack.c.l.b16 %v337
      %v536 = vunpack.c.l.b16 %v338
      %v537 = vpack.c.b16 %v530, %v529
      %v538 = vpack.c.b16 %v532, %v531
      %v539 = vpack.c.b16 %v534, %v533
      %v540 = vpack.c.b16 %v536, %v535
      %v545 = vunpack.c.l.b16 %v363
      %v546 = vunpack.c.h.b16 %v363
      %v547 = vunpack.c.l.b16 %v364
      %v548 = vunpack.c.h.b16 %v364
      %v549 = vunpack.c.l.b16 %v365
      %v550 = vunpack.c.h.b16 %v365
      %v551 = vunpack.c.l.b16 %v366
      %v552 = vunpack.c.h.b16 %v366
      %v553 = vpack.c.b16 %v547, %v545
      %v554 = vpack.c.b16 %v548, %v546
      %v555 = vpack.c.b16 %v551, %v549
      %v556 = vpack.c.b16 %v552, %v550
      %v562 = vsel %vm417, %v537, 0
      %v565 = vsel %vm417, %v538, 0
      %v568 = vsel %vm417, %v539, 0
      %v571 = vsel %vm417, %v540, 0
      %573 = vmatprep.subr.bf16.mxu0 %v554
      %574 = vmatpush1.bf16.msra.mxu0 %v553
      %575 = vmatprep.subr.bf16.mxu0 %v556
      %576 = vmatpush1.bf16.msra.mxu0 %v555
      %577 = vmatprep.subr.bf16.mxu0 0
      %578 = vmatpush1.bf16.msra.mxu0 0
      %579 = vmatprep.subr.bf16.mxu0 0
      %580 = vmatpush1.bf16.msra.mxu0 0
      %581 = vmatprep.subr.bf16.mxu0 0
      %582 = vmatpush1.bf16.msra.mxu0 0
      %583 = vmatprep.subr.bf16.mxu0 0
      %584 = vmatpush1.bf16.msra.mxu0 0
      %585 = vmatprep.subr.bf16.mxu0 0
      %586 = vmatpush1.bf16.msra.mxu0 0
      %587 = vmatprep.subr.bf16.mxu0 0
      %588 = vmatpush1.bf16.msra.mxu0 0
      %589 = vmatprep.subr.bf16.mxu0 0
      %590 = vmatpush1.bf16.msra.mxu0 0
      %591 = vmatprep.subr.bf16.mxu0 0
      %592 = vmatpush1.bf16.msra.mxu0 0
      %593 = vmatprep.subr.bf16.mxu0 0
      %594 = vmatpush1.bf16.msra.mxu0 0
      %595 = vmatprep.subr.bf16.mxu0 0
      %596 = vmatpush1.bf16.msra.mxu0 0
      %597 = vmatprep.subr.bf16.mxu0 0
      %598 = vmatpush1.bf16.msra.mxu0 0
      %599 = vmatprep.subr.bf16.mxu0 0
      %600 = vmatpush1.bf16.msra.mxu0 0
      %601 = vmatprep.subr.bf16.mxu0 0
      %602 = vmatpush1.bf16.msra.mxu0 0
      %603 = vmatprep.subr.bf16.mxu0 0
      %604 = vmatpush1.bf16.msra.mxu0 0
      %605 = vmatprep.mubr.bf16.mxu0 0
      %606 = vmatmul.mubr.bf16.gmra.mrb[0].mxu0 %v562
      %v607 = vpop.f32.mrb[0].mxu0
      %v608 = vadd.f32 %v484, %v607
      %v609 = vpop.f32.mrb[0].mxu0
      %v610 = vadd.f32 %v484, %v609
      %v611 = vpop.f32.mrb[0].mxu0
      %v612 = vadd.f32 %v489, %v611
      %v613 = vpop.f32.mrb[0].mxu0
      %v614 = vadd.f32 %v489, %v613
      %615 = vmatprep.mubr.bf16.mxu0 0
      %616 = vmatmul.mubr.bf16.gmra.mrb[0].mxu0 %v565
      %v617 = vpop.f32.mrb[0].mxu0
      %v618 = vadd.f32 %v494, %v617
      %v619 = vpop.f32.mrb[0].mxu0
      %v620 = vadd.f32 %v494, %v619
      %v621 = vpop.f32.mrb[0].mxu0
      %v622 = vadd.f32 %v499, %v621
      %v623 = vpop.f32.mrb[0].mxu0
      %v624 = vadd.f32 %v499, %v623
      %625 = vmatprep.mubr.bf16.mxu0 0
      %626 = vmatmul.mubr.bf16.gmra.mrb[0].mxu0 %v568
      %v627 = vpop.f32.mrb[0].mxu0
      %v628 = vadd.f32 %v504, %v627
      %v629 = vpop.f32.mrb[0].mxu0
      %v630 = vadd.f32 %v504, %v629
      %v631 = vpop.f32.mrb[0].mxu0
      %v632 = vadd.f32 %v509, %v631
      %v633 = vpop.f32.mrb[0].mxu0
      %v634 = vadd.f32 %v509, %v633
      %635 = vmatprep.mubr.bf16.mxu0 0
      %636 = vmatmul.mubr.bf16.gmra.mrb[0].mxu0 %v571
      %v637 = vpop.f32.mrb[0].mxu0
      %v638 = vadd.f32 %v514, %v637
      %v639 = vpop.f32.mrb[0].mxu0
      %v640 = vadd.f32 %v514, %v639
      %v641 = vpop.f32.mrb[0].mxu0
      %v642 = vadd.f32 %v519, %v641
      %v643 = vpop.f32.mrb[0].mxu0
      %v644 = vadd.f32 %v519, %v643
      %645 = vdwg.mxu0
      %v646 = vpack.c.bf16 %v612, %v608
      %v647 = vpack.c.bf16 %v614, %v610
      %v648 = vpack.c.bf16 %v622, %v618
      %v649 = vpack.c.bf16 %v624, %v620
      %v650 = vpack.c.bf16 %v632, %v628
      %v651 = vpack.c.bf16 %v634, %v630
      %v652 = vpack.c.bf16 %v642, %v638
      %v653 = vpack.c.bf16 %v644, %v640
      %654 = vxpose.xlu0.c.b16.start [1/8] %v646, 128
      %655 = vxpose.xlu0.c.b16.cont [2/8] %v648, 128
      %656 = vxpose.xlu0.c.b16.cont [3/8] 0, 128
      %657 = vxpose.xlu0.c.b16.cont [4/8] 0, 128
      %658 = vxpose.xlu0.c.b16.cont [5/8] 0, 128
      %659 = vxpose.xlu0.c.b16.cont [6/8] 0, 128
      %660 = vxpose.xlu0.c.b16.cont [7/8] 0, 128
      %661 = vxpose.xlu0.c.b16.end [8/8] 0, 128
      %v662 = vpop.trf.xlu0
      %v663 = vpop.trf.xlu0
      %v664 = vpop.trf.xlu0
      %v665 = vpop.trf.xlu0
      %v666 = vpop.trf.xlu0
      %v667 = vpop.trf.xlu0
      %v668 = vpop.trf.xlu0
      %v669 = vpop.trf.xlu0
      %670 = vxpose.xlu0.c.b16.start [1/8] %v647, 128
      %671 = vxpose.xlu0.c.b16.cont [2/8] %v649, 128
      %672 = vxpose.xlu0.c.b16.cont [3/8] 0, 128
      %673 = vxpose.xlu0.c.b16.cont [4/8] 0, 128
      %674 = vxpose.xlu0.c.b16.cont [5/8] 0, 128
      %675 = vxpose.xlu0.c.b16.cont [6/8] 0, 128
      %676 = vxpose.xlu0.c.b16.cont [7/8] 0, 128
      %677 = vxpose.xlu0.c.b16.end [8/8] 0, 128
      %v678 = vpop.trf.xlu0
      %v679 = vpop.trf.xlu0
      %v680 = vpop.trf.xlu0
      %v681 = vpop.trf.xlu0
      %v682 = vpop.trf.xlu0
      %v683 = vpop.trf.xlu0
      %v684 = vpop.trf.xlu0
      %v685 = vpop.trf.xlu0
      %v687 = vsel %vm417, %v662, 0
      %v690 = vsel %vm417, %v663, 0
      %v693 = vsel %vm417, %v664, 0
      %v696 = vsel %vm417, %v665, 0
      %v699 = vsel %vm417, %v666, 0
      %v702 = vsel %vm417, %v667, 0
      %v705 = vsel %vm417, %v668, 0
      %v708 = vsel %vm417, %v669, 0
      %v711 = vsel %vm417, %v678, 0
      %v714 = vsel %vm417, %v679, 0
      %v717 = vsel %vm417, %v680, 0
      %v720 = vsel %vm417, %v681, 0
      %v723 = vsel %vm417, %v682, 0
      %v726 = vsel %vm417, %v683, 0
      %v729 = vsel %vm417, %v684, 0
      %v732 = vsel %vm417, %v685, 0
      %734 = vmatprep.subr.bf16.mxu0 0
      %735 = vmatpush1.bf16.msra.mxu0 %v477
      %736 = vmatprep.subr.bf16.mxu0 0
      %737 = vmatpush1.bf16.msra.mxu0 %v479
      %738 = vmatprep.subr.bf16.mxu0 0
      %739 = vmatpush1.bf16.msra.mxu0 0
      %740 = vmatprep.subr.bf16.mxu0 0
      %741 = vmatpush1.bf16.msra.mxu0 0
      %742 = vmatprep.subr.bf16.mxu0 0
      %743 = vmatpush1.bf16.msra.mxu0 0
      %744 = vmatprep.subr.bf16.mxu0 0
      %745 = vmatpush1.bf16.msra.mxu0 0
      %746 = vmatprep.subr.bf16.mxu0 0
      %747 = vmatpush1.bf16.msra.mxu0 0
      %748 = vmatprep.subr.bf16.mxu0 0
      %749 = vmatpush1.bf16.msra.mxu0 0
      %750 = vmatprep.subr.bf16.mxu0 0
      %751 = vmatpush1.bf16.msra.mxu0 0
      %752 = vmatprep.subr.bf16.mxu0 0
      %753 = vmatpush1.bf16.msra.mxu0 0
      %754 = vmatprep.subr.bf16.mxu0 0
      %755 = vmatpush1.bf16.msra.mxu0 0
      %756 = vmatprep.subr.bf16.mxu0 0
      %757 = vmatpush1.bf16.msra.mxu0 0
      %758 = vmatprep.subr.bf16.mxu0 0
      %759 = vmatpush1.bf16.msra.mxu0 0
      %760 = vmatprep.subr.bf16.mxu0 0
      %761 = vmatpush1.bf16.msra.mxu0 0
      %762 = vmatprep.subr.bf16.mxu0 0
      %763 = vmatpush1.bf16.msra.mxu0 0
      %764 = vmatprep.subr.bf16.mxu0 0
      %765 = vmatpush1.bf16.msra.mxu0 0
      %766 = vmatprep.mubr.bf16.mxu0 0
      %767 = vmatmul.mubr.bf16.gmra.mrb[0].mxu0 %v687
      %v768 = vpop.f32.mrb[0].mxu0
      %v769 = vadd.f32 0.0, %v768
      %v770 = vpop.f32.mrb[0].mxu0
      %v771 = vpop.f32.mrb[0].mxu0
      %v772 = vadd.f32 0.0, %v771
      %v773 = vpop.f32.mrb[0].mxu0
      %774 = vmatprep.mubr.bf16.mxu0 0
      %775 = vmatmul.mubr.bf16.gmra.mrb[0].mxu0 %v690
      %v776 = vpop.f32.mrb[0].mxu0
      %v777 = vadd.f32 0.0, %v776
      %v778 = vpop.f32.mrb[0].mxu0
      %v779 = vpop.f32.mrb[0].mxu0
      %v780 = vadd.f32 0.0, %v779
      %v781 = vpop.f32.mrb[0].mxu0
      %782 = vmatprep.mubr.bf16.mxu0 0
      %783 = vmatmul.mubr.bf16.gmra.mrb[0].mxu0 %v693
      %v784 = vpop.f32.mrb[0].mxu0
      %v785 = vadd.f32 0.0, %v784
      %v786 = vpop.f32.mrb[0].mxu0
      %v787 = vpop.f32.mrb[0].mxu0
      %v788 = vadd.f32 0.0, %v787
      %v789 = vpop.f32.mrb[0].mxu0
      %790 = vmatprep.mubr.bf16.mxu0 0
      %791 = vmatmul.mubr.bf16.gmra.mrb[0].mxu0 %v696
      %v792 = vpop.f32.mrb[0].mxu0
      %v793 = vadd.f32 0.0, %v792
      %v794 = vpop.f32.mrb[0].mxu0
      %v795 = vpop.f32.mrb[0].mxu0
      %v796 = vadd.f32 0.0, %v795
      %v797 = vpop.f32.mrb[0].mxu0
      %798 = vmatprep.mubr.bf16.mxu0 0
      %799 = vmatmul.mubr.bf16.gmra.mrb[0].mxu0 %v699
      %v800 = vpop.f32.mrb[0].mxu0
      %v801 = vadd.f32 0.0, %v800
      %v802 = vpop.f32.mrb[0].mxu0
      %v803 = vpop.f32.mrb[0].mxu0
      %v804 = vadd.f32 0.0, %v803
      %v805 = vpop.f32.mrb[0].mxu0
      %806 = vmatprep.mubr.bf16.mxu0 0
      %807 = vmatmul.mubr.bf16.gmra.mrb[0].mxu0 %v702
      %v808 = vpop.f32.mrb[0].mxu0
      %v809 = vadd.f32 0.0, %v808
      %v810 = vpop.f32.mrb[0].mxu0
      %v811 = vpop.f32.mrb[0].mxu0
      %v812 = vadd.f32 0.0, %v811
      %v813 = vpop.f32.mrb[0].mxu0
      %814 = vmatprep.mubr.bf16.mxu0 0
      %815 = vmatmul.mubr.bf16.gmra.mrb[0].mxu0 %v705
      %v816 = vpop.f32.mrb[0].mxu0
      %v817 = vadd.f32 0.0, %v816
      %v818 = vpop.f32.mrb[0].mxu0
      %v819 = vpop.f32.mrb[0].mxu0
      %v820 = vadd.f32 0.0, %v819
      %v821 = vpop.f32.mrb[0].mxu0
      %822 = vmatprep.mubr.bf16.mxu0 0
      %823 = vmatmul.mubr.bf16.gmra.mrb[0].mxu0 %v708
      %v824 = vpop.f32.mrb[0].mxu0
      %v825 = vadd.f32 0.0, %v824
      %v826 = vpop.f32.mrb[0].mxu0
      %v827 = vpop.f32.mrb[0].mxu0
      %v828 = vadd.f32 0.0, %v827
      %v829 = vpop.f32.mrb[0].mxu0
      %830 = vmatprep.mubr.bf16.mxu0 0
      %831 = vmatmul.mubr.bf16.gmra.mrb[0].mxu0 %v711
      %v832 = vpop.f32.mrb[0].mxu0
      %v833 = vadd.f32 0.0, %v832
      %v834 = vpop.f32.mrb[0].mxu0
      %v835 = vpop.f32.mrb[0].mxu0
      %v836 = vadd.f32 0.0, %v835
      %v837 = vpop.f32.mrb[0].mxu0
      %838 = vmatprep.mubr.bf16.mxu0 0
      %839 = vmatmul.mubr.bf16.gmra.mrb[0].mxu0 %v714
      %v840 = vpop.f32.mrb[0].mxu0
      %v841 = vadd.f32 0.0, %v840
      %v842 = vpop.f32.mrb[0].mxu0
      %v843 = vpop.f32.mrb[0].mxu0
      %v844 = vadd.f32 0.0, %v843
      %v845 = vpop.f32.mrb[0].mxu0
      %846 = vmatprep.mubr.bf16.mxu0 0
      %847 = vmatmul.mubr.bf16.gmra.mrb[0].mxu0 %v717
      %v848 = vpop.f32.mrb[0].mxu0
      %v849 = vadd.f32 0.0, %v848
      %v850 = vpop.f32.mrb[0].mxu0
      %v851 = vpop.f32.mrb[0].mxu0
      %v852 = vadd.f32 0.0, %v851
      %v853 = vpop.f32.mrb[0].mxu0
      %854 = vmatprep.mubr.bf16.mxu0 0
      %855 = vmatmul.mubr.bf16.gmra.mrb[0].mxu0 %v720
      %v856 = vpop.f32.mrb[0].mxu0
      %v857 = vadd.f32 0.0, %v856
      %v858 = vpop.f32.mrb[0].mxu0
      %v859 = vpop.f32.mrb[0].mxu0
      %v860 = vadd.f32 0.0, %v859
      %v861 = vpop.f32.mrb[0].mxu0
      %862 = vmatprep.mubr.bf16.mxu0 0
      %863 = vmatmul.mubr.bf16.gmra.mrb[0].mxu0 %v723
      %v864 = vpop.f32.mrb[0].mxu0
      %v865 = vadd.f32 0.0, %v864
      %v866 = vpop.f32.mrb[0].mxu0
      %v867 = vpop.f32.mrb[0].mxu0
      %v868 = vadd.f32 0.0, %v867
      %v869 = vpop.f32.mrb[0].mxu0
      %870 = vmatprep.mubr.bf16.mxu0 0
      %871 = vmatmul.mubr.bf16.gmra.mrb[0].mxu0 %v726
      %v872 = vpop.f32.mrb[0].mxu0
      %v873 = vadd.f32 0.0, %v872
      %v874 = vpop.f32.mrb[0].mxu0
      %v875 = vpop.f32.mrb[0].mxu0
      %v876 = vadd.f32 0.0, %v875
      %v877 = vpop.f32.mrb[0].mxu0
      %878 = vmatprep.mubr.bf16.mxu0 0
      %879 = vmatmul.mubr.bf16.gmra.mrb[0].mxu0 %v729
      %v880 = vpop.f32.mrb[0].mxu0
      %v881 = vadd.f32 0.0, %v880
      %v882 = vpop.f32.mrb[0].mxu0
      %v883 = vpop.f32.mrb[0].mxu0
      %v884 = vadd.f32 0.0, %v883
      %v885 = vpop.f32.mrb[0].mxu0
      %886 = vmatprep.mubr.bf16.mxu0 0
      %887 = vmatmul.mubr.bf16.gmra.mrb[0].mxu0 %v732
      %v888 = vpop.f32.mrb[0].mxu0
      %v889 = vadd.f32 0.0, %v888
      %v890 = vpop.f32.mrb[0].mxu0
      %v891 = vpop.f32.mrb[0].mxu0
      %v892 = vadd.f32 0.0, %v891
      %v893 = vpop.f32.mrb[0].mxu0
      %894 = vdwg.mxu0
      %v895 = vmax.f32 %v769, %v785
      %v896 = vmax.f32 %v772, %v788
      %v897 = vmax.f32 %v777, %v793
      %v898 = vmax.f32 %v780, %v796
      %v899 = vmax.f32 %v895, %v801
      %v900 = vmax.f32 %v896, %v804
      %v901 = vmax.f32 %v897, %v809
      %v902 = vmax.f32 %v898, %v812
      %v903 = vmax.f32 %v899, %v817
      %v904 = vmax.f32 %v900, %v820
      %v905 = vmax.f32 %v901, %v825
      %v906 = vmax.f32 %v902, %v828
      %v907 = vmax.f32 %v903, %v833
      %v908 = vmax.f32 %v904, %v836
      %v909 = vmax.f32 %v905, %v841
      %v910 = vmax.f32 %v906, %v844
      %v911 = vmax.f32 %v907, %v849
      %v912 = vmax.f32 %v908, %v852
      %v913 = vmax.f32 %v909, %v857
      %v914 = vmax.f32 %v910, %v860
      %v915 = vmax.f32 %v911, %v865
      %v916 = vmax.f32 %v912, %v868
      %v917 = vmax.f32 %v913, %v873
      %v918 = vmax.f32 %v914, %v876
      %v919 = vmax.f32 %v915, %v881
      %v920 = vmax.f32 %v916, %v884
      %v921 = vmax.f32 %v917, %v889
      %v922 = vmax.f32 %v918, %v892
      %v923 = vmax.f32 %v919, %v920
      %v924 = vmax.f32 %v921, %v922
      %v925 = vmax.f32 %v923, %v924
      %v926 = vrot.slane %v925, 4
      %v927 = vmax.f32 %v925, %v926
      %v928 = vrot.slane %v927, 2
      %v929 = vmax.f32 %v927, %v928
      %v930 = vrot.slane %v929, 1
      %v931 = vmax.f32 %v929, %v930
      %v932 = vsub.f32 %v769, %v931
      %v933 = vsub.f32 %v772, %v931
      %v934 = vsub.f32 %v777, %v931
      %v935 = vsub.f32 %v780, %v931
      %v936 = vsub.f32 %v785, %v931
      %v937 = vsub.f32 %v788, %v931
      %v938 = vsub.f32 %v793, %v931
      %v939 = vsub.f32 %v796, %v931
      %v940 = vsub.f32 %v801, %v931
      %v941 = vsub.f32 %v804, %v931
      %v942 = vsub.f32 %v809, %v931
      %v943 = vsub.f32 %v812, %v931
      %v944 = vsub.f32 %v817, %v931
      %v945 = vsub.f32 %v820, %v931
      %v946 = vsub.f32 %v825, %v931
      %v947 = vsub.f32 %v828, %v931
      %v948 = vsub.f32 %v833, %v931
      %v949 = vsub.f32 %v836, %v931
      %v950 = vsub.f32 %v841, %v931
      %v951 = vsub.f32 %v844, %v931
      %v952 = vsub.f32 %v849, %v931
      %v953 = vsub.f32 %v852, %v931
      %v954 = vsub.f32 %v857, %v931
      %v955 = vsub.f32 %v860, %v931
      %v956 = vsub.f32 %v865, %v931
      %v957 = vsub.f32 %v868, %v931
      %v958 = vsub.f32 %v873, %v931
      %v959 = vsub.f32 %v876, %v931
      %v960 = vsub.f32 %v881, %v931
      %v961 = vsub.f32 %v884, %v931
      %v962 = vsub.f32 %v889, %v931
      %v963 = vsub.f32 %v892, %v931
      %v964 = vmul.f32 %v932, 1.442695
      %v965 = vpow.pop %v964
      %v966 = vmul.f32 %v933, 1.442695
      %v967 = vpow.pop %v966
      %v968 = vmul.f32 %v934, 1.442695
      %v969 = vpow.pop %v968
      %v970 = vmul.f32 %v935, 1.442695
      %v971 = vpow.pop %v970
      %v972 = vmul.f32 %v936, 1.442695
      %v973 = vpow.pop %v972
      %v974 = vmul.f32 %v937, 1.442695
      %v975 = vpow.pop %v974
      %v976 = vmul.f32 %v938, 1.442695
      %v977 = vpow.pop %v976
      %v978 = vmul.f32 %v939, 1.442695
      %v979 = vpow.pop %v978
      %v980 = vmul.f32 %v940, 1.442695
      %v981 = vpow.pop %v980
      %v982 = vmul.f32 %v941, 1.442695
      %v983 = vpow.pop %v982
      %v984 = vmul.f32 %v942, 1.442695
      %v985 = vpow.pop %v984
      %v986 = vmul.f32 %v943, 1.442695
      %v987 = vpow.pop %v986
      %v988 = vmul.f32 %v944, 1.442695
      %v989 = vpow.pop %v988
      %v990 = vmul.f32 %v945, 1.442695
      %v991 = vpow.pop %v990
      %v992 = vmul.f32 %v946, 1.442695
      %v993 = vpow.pop %v992
      %v994 = vmul.f32 %v947, 1.442695
      %v995 = vpow.pop %v994
      %v996 = vmul.f32 %v948, 1.442695
      %v997 = vpow.pop %v996
      %v998 = vmul.f32 %v949, 1.442695
      %v999 = vpow.pop %v998
      %v1000 = vmul.f32 %v950, 1.442695
      %v1001 = vpow.pop %v1000
      %v1002 = vmul.f32 %v951, 1.442695
      %v1003 = vpow.pop %v1002
      %v1004 = vmul.f32 %v952, 1.442695
      %v1005 = vpow.pop %v1004
      %v1006 = vmul.f32 %v953, 1.442695
      %v1007 = vpow.pop %v1006
      %v1008 = vmul.f32 %v954, 1.442695
      %v1009 = vpow.pop %v1008
      %v1010 = vmul.f32 %v955, 1.442695
      %v1011 = vpow.pop %v1010
      %v1012 = vmul.f32 %v956, 1.442695
      %v1013 = vpow.pop %v1012
      %v1014 = vmul.f32 %v957, 1.442695
      %v1015 = vpow.pop %v1014
      %v1016 = vmul.f32 %v958, 1.442695
      %v1017 = vpow.pop %v1016
      %v1018 = vmul.f32 %v959, 1.442695
      %v1019 = vpow.pop %v1018
      %v1020 = vmul.f32 %v960, 1.442695
      %v1021 = vpow.pop %v1020
      %v1022 = vmul.f32 %v961, 1.442695
      %v1023 = vpow.pop %v1022
      %v1024 = vmul.f32 %v962, 1.442695
      %v1025 = vpow.pop %v1024
      %v1026 = vmul.f32 %v963, 1.442695
      %v1027 = vpow.pop %v1026
      %v1028 = vadd.f32 %v965, %v967
      %v1029 = vadd.f32 %v1028, %v969
      %v1030 = vadd.f32 %v1029, %v971
      %v1031 = vadd.f32 %v1030, %v973
      %v1032 = vadd.f32 %v1031, %v975
      %v1033 = vadd.f32 %v1032, %v977
      %v1034 = vadd.f32 %v1033, %v979
      %v1035 = vadd.f32 %v1034, %v981
      %v1036 = vadd.f32 %v1035, %v983
      %v1037 = vadd.f32 %v1036, %v985
      %v1038 = vadd.f32 %v1037, %v987
      %v1039 = vadd.f32 %v1038, %v989
      %v1040 = vadd.f32 %v1039, %v991
      %v1041 = vadd.f32 %v1040, %v993
      %v1042 = vadd.f32 %v1041, %v995
      %v1043 = vadd.f32 %v1042, %v997
      %v1044 = vadd.f32 %v1043, %v999
      %v1045 = vadd.f32 %v1044, %v1001
      %v1046 = vadd.f32 %v1045, %v1003
      %v1047 = vadd.f32 %v1046, %v1005
      %v1048 = vadd.f32 %v1047, %v1007
      %v1049 = vadd.f32 %v1048, %v1009
      %v1050 = vadd.f32 %v1049, %v1011
      %v1051 = vadd.f32 %v1050, %v1013
      %v1052 = vadd.f32 %v1051, %v1015
      %v1053 = vadd.f32 %v1052, %v1017
      %v1054 = vadd.f32 %v1053, %v1019
      %v1055 = vadd.f32 %v1054, %v1021
      %v1056 = vadd.f32 %v1055, %v1023
      %v1057 = vadd.f32 %v1056, %v1025
      %v1058 = vadd.f32 %v1057, %v1027
      %v1059 = vrot.slane %v1058, 4
      %v1060 = vadd.f32 %v1058, %v1059
      %v1061 = vrot.slane %v1060, 2
      %v1062 = vadd.f32 %v1060, %v1061
      %v1063 = vrot.slane %v1062, 1
      %v1064 = vadd.f32 %v1062, %v1063
      %v1065 = vpack.c.bf16 %v967, %v965
      %v1066 = vpack.c.bf16 %v971, %v969
      %v1067 = vpack.c.bf16 %v975, %v973
      %v1068 = vpack.c.bf16 %v979, %v977
      %v1069 = vpack.c.bf16 %v983, %v981
      %v1070 = vpack.c.bf16 %v987, %v985
      %v1071 = vpack.c.bf16 %v991, %v989
      %v1072 = vpack.c.bf16 %v995, %v993
      %v1073 = vpack.c.bf16 %v999, %v997
      %v1074 = vpack.c.bf16 %v1003, %v1001
      %v1075 = vpack.c.bf16 %v1007, %v1005
      %v1076 = vpack.c.bf16 %v1011, %v1009
      %v1077 = vpack.c.bf16 %v1015, %v1013
      %v1078 = vpack.c.bf16 %v1019, %v1017
      %v1079 = vpack.c.bf16 %v1023, %v1021
      %v1080 = vpack.c.bf16 %v1027, %v1025
      %1081 = vmatprep.subr.bf16.mxu0 0
      %1082 = vmatpush1.bf16.msra.mxu0 %v1065
      %1083 = vmatprep.subr.bf16.mxu0 0
      %1084 = vmatpush1.bf16.msra.mxu0 %v1066
      %1085 = vmatprep.subr.bf16.mxu0 0
      %1086 = vmatpush1.bf16.msra.mxu0 %v1067
      %1087 = vmatprep.subr.bf16.mxu0 0
      %1088 = vmatpush1.bf16.msra.mxu0 %v1068
      %1089 = vmatprep.subr.bf16.mxu0 0
      %1090 = vmatpush1.bf16.msra.mxu0 %v1069
      %1091 = vmatprep.subr.bf16.mxu0 0
      %1092 = vmatpush1.bf16.msra.mxu0 %v1070
      %1093 = vmatprep.subr.bf16.mxu0 0
      %1094 = vmatpush1.bf16.msra.mxu0 %v1071
      %1095 = vmatprep.subr.bf16.mxu0 0
      %1096 = vmatpush1.bf16.msra.mxu0 %v1072
      %1097 = vmatprep.subr.bf16.mxu0 0
      %1098 = vmatpush1.bf16.msra.mxu0 %v1073
      %1099 = vmatprep.subr.bf16.mxu0 0
      %1100 = vmatpush1.bf16.msra.mxu0 %v1074
      %1101 = vmatprep.subr.bf16.mxu0 0
      %1102 = vmatpush1.bf16.msra.mxu0 %v1075
      %1103 = vmatprep.subr.bf16.mxu0 0
      %1104 = vmatpush1.bf16.msra.mxu0 %v1076
      %1105 = vmatprep.subr.bf16.mxu0 0
      %1106 = vmatpush1.bf16.msra.mxu0 %v1077
      %1107 = vmatprep.subr.bf16.mxu0 0
      %1108 = vmatpush1.bf16.msra.mxu0 %v1078
      %1109 = vmatprep.subr.bf16.mxu0 0
      %1110 = vmatpush1.bf16.msra.mxu0 %v1079
      %1111 = vmatprep.subr.bf16.mxu0 0
      %1112 = vmatpush1.bf16.msra.mxu0 %v1080
      %1113 = vmatprep.mubr.bf16.mxu0 %v651
      %1114 = vmatmul.mubr.bf16.gmra.mrb[0].mxu0 %v650
      %v1115 = vpop.f32.mrb[0].mxu0
      %v1116 = vadd.f32 0.0, %v1115
      %v1117 = vpop.f32.mrb[0].mxu0
      %v1118 = vpop.f32.mrb[0].mxu0
      %v1119 = vadd.f32 0.0, %v1118
      %v1120 = vpop.f32.mrb[0].mxu0
      %1121 = vmatprep.mubr.bf16.mxu0 %v653
      %1122 = vmatmul.mubr.bf16.gmra.mrb[0].mxu0 %v652
      %v1123 = vpop.f32.mrb[0].mxu0
      %v1124 = vadd.f32 0.0, %v1123
      %v1125 = vpop.f32.mrb[0].mxu0
      %v1126 = vpop.f32.mrb[0].mxu0
      %v1127 = vadd.f32 0.0, %v1126
      %v1128 = vpop.f32.mrb[0].mxu0
      %1129 = vdwg.mxu0
      %v1130 = vrcp.pop %v1064
      %v1131 = vmul.f32 %v1116, %v1130
      %v1132 = vmul.f32 %v1119, %v1130
      %v1133 = vmul.f32 %v1124, %v1130
      %v1134 = vmul.f32 %v1127, %v1130
      %v1135 = vpack.c.bf16 %v1132, %v1131
      %v1136 = vpack.c.bf16 %v1134, %v1133
      %1138 = vset.pattern.permute.xlu0 0
      %1139 = vperm.xlu0 %1138, %v355
      %v1140 = vpop.permute.xlu0 %1139
      %1143 = vset.pattern.permute.xlu0 0
      %1144 = vperm.xlu0 %1143, %v356
      %v1145 = vpop.permute.xlu0 %1144
      %1148 = vset.pattern.permute.xlu0 0
      %1149 = vperm.xlu0 %1148, %v357
      %v1150 = vpop.permute.xlu0 %1149
      %1153 = vset.pattern.permute.xlu0 0
      %1154 = vperm.xlu0 %1153, %v358
      %v1155 = vpop.permute.xlu0 %1154
      %v1161 = vunpack.c.l.b16 %v339
      %v1162 = vunpack.c.l.b16 %v340
      %v1163 = vunpack.c.l.b16 %v341
      %v1164 = vunpack.c.l.b16 %v342
      %v1165 = vpack.c.b16 %v1162, %v1161
      %v1166 = vpack.c.b16 %v1164, %v1163
      %v1168 = vsel %vm417, %v1165, 0
      %v1171 = vsel %vm417, %v1166, 0
      %1173 = vmatprep.subr.bf16.mxu0 0
      %1174 = vmatpush1.bf16.msra.mxu0 %v1135
      %1175 = vmatprep.subr.bf16.mxu0 0
      %1176 = vmatpush1.bf16.msra.mxu0 %v1136
      %1177 = vmatprep.subr.bf16.mxu0 0
      %1178 = vmatpush1.bf16.msra.mxu0 0
      %1179 = vmatprep.subr.bf16.mxu0 0
      %1180 = vmatpush1.bf16.msra.mxu0 0
      %1181 = vmatprep.subr.bf16.mxu0 0
      %1182 = vmatpush1.bf16.msra.mxu0 0
      %1183 = vmatprep.subr.bf16.mxu0 0
      %1184 = vmatpush1.bf16.msra.mxu0 0
      %1185 = vmatprep.subr.bf16.mxu0 0
      %1186 = vmatpush1.bf16.msra.mxu0 0
      %1187 = vmatprep.subr.bf16.mxu0 0
      %1188 = vmatpush1.bf16.msra.mxu0 0
      %1189 = vmatprep.subr.bf16.mxu0 0
      %1190 = vmatpush1.bf16.msra.mxu0 0
      %1191 = vmatprep.subr.bf16.mxu0 0
      %1192 = vmatpush1.bf16.msra.mxu0 0
      %1193 = vmatprep.subr.bf16.mxu0 0
      %1194 = vmatpush1.bf16.msra.mxu0 0
      %1195 = vmatprep.subr.bf16.mxu0 0
      %1196 = vmatpush1.bf16.msra.mxu0 0
      %1197 = vmatprep.subr.bf16.mxu0 0
      %1198 = vmatpush1.bf16.msra.mxu0 0
      %1199 = vmatprep.subr.bf16.mxu0 0
      %1200 = vmatpush1.bf16.msra.mxu0 0
      %1201 = vmatprep.subr.bf16.mxu0 0
      %1202 = vmatpush1.bf16.msra.mxu0 0
      %1203 = vmatprep.subr.bf16.mxu0 0
      %1204 = vmatpush1.bf16.msra.mxu0 0
      %1205 = vmatprep.mubr.bf16.mxu0 0
      %1206 = vmatmul.mubr.bf16.gmra.mrb[0].mxu0 %v1168
      %v1207 = vpop.f32.mrb[0].mxu0
      %v1208 = vadd.f32 %v1140, %v1207
      %v1209 = vpop.f32.mrb[0].mxu0
      %v1210 = vpop.f32.mrb[0].mxu0
      %v1211 = vadd.f32 %v1145, %v1210
      %v1212 = vpop.f32.mrb[0].mxu0
      %1213 = vmatprep.mubr.bf16.mxu0 0
      %1214 = vmatmul.mubr.bf16.gmra.mrb[0].mxu0 %v1171
      %v1215 = vpop.f32.mrb[0].mxu0
      %v1216 = vadd.f32 %v1150, %v1215
      %v1217 = vpop.f32.mrb[0].mxu0
      %v1218 = vpop.f32.mrb[0].mxu0
      %v1219 = vadd.f32 %v1155, %v1218
      %v1220 = vpop.f32.mrb[0].mxu0
      %1221 = vdwg.mxu0
      %1222 = vst [vmem:[%s325] sm:$0xff] %v1208
      %1223 = vst [vmem:[%s325 + $0x10] sm:$0xff] %v1211
      %1224 = vst [vmem:[%s325 + $0x20] sm:$0xff] %v1216
      %1225 = vst [vmem:[%s325 + $0x30] sm:$0xff] %v1219
      %1226 = vmatprep.subr.bf16.mxu0 0
      %1227 = vmatpush1.bf16.msra.mxu0 %v478
      %1228 = vmatprep.subr.bf16.mxu0 0
      %1229 = vmatpush1.bf16.msra.mxu0 %v480
      %1230 = vmatprep.subr.bf16.mxu0 0
      %1231 = vmatpush1.bf16.msra.mxu0 0
      %1232 = vmatprep.subr.bf16.mxu0 0
      %1233 = vmatpush1.bf16.msra.mxu0 0
      %1234 = vmatprep.subr.bf16.mxu0 0
      %1235 = vmatpush1.bf16.msra.mxu0 0
      %1236 = vmatprep.subr.bf16.mxu0 0
      %1237 = vmatpush1.bf16.msra.mxu0 0
      %1238 = vmatprep.subr.bf16.mxu0 0
      %1239 = vmatpush1.bf16.msra.mxu0 0
      %1240 = vmatprep.subr.bf16.mxu0 0
      %1241 = vmatpush1.bf16.msra.mxu0 0
      %1242 = vmatprep.subr.bf16.mxu0 0
      %1243 = vmatpush1.bf16.msra.mxu0 0
      %1244 = vmatprep.subr.bf16.mxu0 0
      %1245 = vmatpush1.bf16.msra.mxu0 0
      %1246 = vmatprep.subr.bf16.mxu0 0
      %1247 = vmatpush1.bf16.msra.mxu0 0
      %1248 = vmatprep.subr.bf16.mxu0 0
      %1249 = vmatpush1.bf16.msra.mxu0 0
      %1250 = vmatprep.subr.bf16.mxu0 0
      %1251 = vmatpush1.bf16.msra.mxu0 0
      %1252 = vmatprep.subr.bf16.mxu0 0
      %1253 = vmatpush1.bf16.msra.mxu0 0
      %1254 = vmatprep.subr.bf16.mxu0 0
      %1255 = vmatpush1.bf16.msra.mxu0 0
      %1256 = vmatprep.subr.bf16.mxu0 0
      %1257 = vmatpush1.bf16.msra.mxu0 0
      %1258 = vmatprep.mubr.bf16.mxu0 0
      %1259 = vmatmul.mubr.bf16.gmra.mrb[0].mxu0 %v687
      %v1260 = vpop.f32.mrb[0].mxu0
      %v1261 = vadd.f32 0.0, %v1260
      %v1262 = vpop.f32.mrb[0].mxu0
      %v1263 = vpop.f32.mrb[0].mxu0
      %v1264 = vadd.f32 0.0, %v1263
      %v1265 = vpop.f32.mrb[0].mxu0
      %1266 = vmatprep.mubr.bf16.mxu0 0
      %1267 = vmatmul.mubr.bf16.gmra.mrb[0].mxu0 %v690
      %v1268 = vpop.f32.mrb[0].mxu0
      %v1269 = vadd.f32 0.0, %v1268
      %v1270 = vpop.f32.mrb[0].mxu0
      %v1271 = vpop.f32.mrb[0].mxu0
      %v1272 = vadd.f32 0.0, %v1271
      %v1273 = vpop.f32.mrb[0].mxu0
      %1274 = vmatprep.mubr.bf16.mxu0 0
      %1275 = vmatmul.mubr.bf16.gmra.mrb[0].mxu0 %v693
      %v1276 = vpop.f32.mrb[0].mxu0
      %v1277 = vadd.f32 0.0, %v1276
      %v1278 = vpop.f32.mrb[0].mxu0
      %v1279 = vpop.f32.mrb[0].mxu0
      %v1280 = vadd.f32 0.0, %v1279
      %v1281 = vpop.f32.mrb[0].mxu0
      %1282 = vmatprep.mubr.bf16.mxu0 0
      %1283 = vmatmul.mubr.bf16.gmra.mrb[0].mxu0 %v696
      %v1284 = vpop.f32.mrb[0].mxu0
      %v1285 = vadd.f32 0.0, %v1284
      %v1286 = vpop.f32.mrb[0].mxu0
      %v1287 = vpop.f32.mrb[0].mxu0
      %v1288 = vadd.f32 0.0, %v1287
      %v1289 = vpop.f32.mrb[0].mxu0
      %1290 = vmatprep.mubr.bf16.mxu0 0
      %1291 = vmatmul.mubr.bf16.gmra.mrb[0].mxu0 %v699
      %v1292 = vpop.f32.mrb[0].mxu0
      %v1293 = vadd.f32 0.0, %v1292
      %v1294 = vpop.f32.mrb[0].mxu0
      %v1295 = vpop.f32.mrb[0].mxu0
      %v1296 = vadd.f32 0.0, %v1295
      %v1297 = vpop.f32.mrb[0].mxu0
      %1298 = vmatprep.mubr.bf16.mxu0 0
      %1299 = vmatmul.mubr.bf16.gmra.mrb[0].mxu0 %v702
      %v1300 = vpop.f32.mrb[0].mxu0
      %v1301 = vadd.f32 0.0, %v1300
      %v1302 = vpop.f32.mrb[0].mxu0
      %v1303 = vpop.f32.mrb[0].mxu0
      %v1304 = vadd.f32 0.0, %v1303
      %v1305 = vpop.f32.mrb[0].mxu0
      %1306 = vmatprep.mubr.bf16.mxu0 0
      %1307 = vmatmul.mubr.bf16.gmra.mrb[0].mxu0 %v705
      %v1308 = vpop.f32.mrb[0].mxu0
      %v1309 = vadd.f32 0.0, %v1308
      %v1310 = vpop.f32.mrb[0].mxu0
      %v1311 = vpop.f32.mrb[0].mxu0
      %v1312 = vadd.f32 0.0, %v1311
      %v1313 = vpop.f32.mrb[0].mxu0
      %1314 = vmatprep.mubr.bf16.mxu0 0
      %1315 = vmatmul.mubr.bf16.gmra.mrb[0].mxu0 %v708
      %v1316 = vpop.f32.mrb[0].mxu0
      %v1317 = vadd.f32 0.0, %v1316
      %v1318 = vpop.f32.mrb[0].mxu0
      %v1319 = vpop.f32.mrb[0].mxu0
      %v1320 = vadd.f32 0.0, %v1319
      %v1321 = vpop.f32.mrb[0].mxu0
      %1322 = vmatprep.mubr.bf16.mxu0 0
      %1323 = vmatmul.mubr.bf16.gmra.mrb[0].mxu0 %v711
      %v1324 = vpop.f32.mrb[0].mxu0
      %v1325 = vadd.f32 0.0, %v1324
      %v1326 = vpop.f32.mrb[0].mxu0
      %v1327 = vpop.f32.mrb[0].mxu0
      %v1328 = vadd.f32 0.0, %v1327
      %v1329 = vpop.f32.mrb[0].mxu0
      %1330 = vmatprep.mubr.bf16.mxu0 0
      %1331 = vmatmul.mubr.bf16.gmra.mrb[0].mxu0 %v714
      %v1332 = vpop.f32.mrb[0].mxu0
      %v1333 = vadd.f32 0.0, %v1332
      %v1334 = vpop.f32.mrb[0].mxu0
      %v1335 = vpop.f32.mrb[0].mxu0
      %v1336 = vadd.f32 0.0, %v1335
      %v1337 = vpop.f32.mrb[0].mxu0
      %1338 = vmatprep.mubr.bf16.mxu0 0
      %1339 = vmatmul.mubr.bf16.gmra.mrb[0].mxu0 %v717
      %v1340 = vpop.f32.mrb[0].mxu0
      %v1341 = vadd.f32 0.0, %v1340
      %v1342 = vpop.f32.mrb[0].mxu0
      %v1343 = vpop.f32.mrb[0].mxu0
      %v1344 = vadd.f32 0.0, %v1343
      %v1345 = vpop.f32.mrb[0].mxu0
      %1346 = vmatprep.mubr.bf16.mxu0 0
      %1347 = vmatmul.mubr.bf16.gmra.mrb[0].mxu0 %v720
      %v1348 = vpop.f32.mrb[0].mxu0
      %v1349 = vadd.f32 0.0, %v1348
      %v1350 = vpop.f32.mrb[0].mxu0
      %v1351 = vpop.f32.mrb[0].mxu0
      %v1352 = vadd.f32 0.0, %v1351
      %v1353 = vpop.f32.mrb[0].mxu0
      %1354 = vmatprep.mubr.bf16.mxu0 0
      %1355 = vmatmul.mubr.bf16.gmra.mrb[0].mxu0 %v723
      %v1356 = vpop.f32.mrb[0].mxu0
      %v1357 = vadd.f32 0.0, %v1356
      %v1358 = vpop.f32.mrb[0].mxu0
      %v1359 = vpop.f32.mrb[0].mxu0
      %v1360 = vadd.f32 0.0, %v1359
      %v1361 = vpop.f32.mrb[0].mxu0
      %1362 = vmatprep.mubr.bf16.mxu0 0
      %1363 = vmatmul.mubr.bf16.gmra.mrb[0].mxu0 %v726
      %v1364 = vpop.f32.mrb[0].mxu0
      %v1365 = vadd.f32 0.0, %v1364
      %v1366 = vpop.f32.mrb[0].mxu0
      %v1367 = vpop.f32.mrb[0].mxu0
      %v1368 = vadd.f32 0.0, %v1367
      %v1369 = vpop.f32.mrb[0].mxu0
      %1370 = vmatprep.mubr.bf16.mxu0 0
      %1371 = vmatmul.mubr.bf16.gmra.mrb[0].mxu0 %v729
      %v1372 = vpop.f32.mrb[0].mxu0
      %v1373 = vadd.f32 0.0, %v1372
      %v1374 = vpop.f32.mrb[0].mxu0
      %v1375 = vpop.f32.mrb[0].mxu0
      %v1376 = vadd.f32 0.0, %v1375
      %v1377 = vpop.f32.mrb[0].mxu0
      %1378 = vmatprep.mubr.bf16.mxu0 0
      %1379 = vmatmul.mubr.bf16.gmra.mrb[0].mxu0 %v732
      %v1380 = vpop.f32.mrb[0].mxu0
      %v1381 = vadd.f32 0.0, %v1380
      %v1382 = vpop.f32.mrb[0].mxu0
      %v1383 = vpop.f32.mrb[0].mxu0
      %v1384 = vadd.f32 0.0, %v1383
      %v1385 = vpop.f32.mrb[0].mxu0
      %1386 = vdwg.mxu0
      %v1387 = vmax.f32 %v1261, %v1277
      %v1388 = vmax.f32 %v1264, %v1280
      %v1389 = vmax.f32 %v1269, %v1285
      %v1390 = vmax.f32 %v1272, %v1288
      %v1391 = vmax.f32 %v1387, %v1293
      %v1392 = vmax.f32 %v1388, %v1296
      %v1393 = vmax.f32 %v1389, %v1301
      %v1394 = vmax.f32 %v1390, %v1304
      %v1395 = vmax.f32 %v1391, %v1309
      %v1396 = vmax.f32 %v1392, %v1312
      %v1397 = vmax.f32 %v1393, %v1317
      %v1398 = vmax.f32 %v1394, %v1320
      %v1399 = vmax.f32 %v1395, %v1325
      %v1400 = vmax.f32 %v1396, %v1328
      %v1401 = vmax.f32 %v1397, %v1333
      %v1402 = vmax.f32 %v1398, %v1336
      %v1403 = vmax.f32 %v1399, %v1341
      %v1404 = vmax.f32 %v1400, %v1344
      %v1405 = vmax.f32 %v1401, %v1349
      %v1406 = vmax.f32 %v1402, %v1352
      %v1407 = vmax.f32 %v1403, %v1357
      %v1408 = vmax.f32 %v1404, %v1360
      %v1409 = vmax.f32 %v1405, %v1365
      %v1410 = vmax.f32 %v1406, %v1368
      %v1411 = vmax.f32 %v1407, %v1373
      %v1412 = vmax.f32 %v1408, %v1376
      %v1413 = vmax.f32 %v1409, %v1381
      %v1414 = vmax.f32 %v1410, %v1384
      %v1415 = vmax.f32 %v1411, %v1412
      %v1416 = vmax.f32 %v1413, %v1414
      %v1417 = vmax.f32 %v1415, %v1416
      %v1418 = vrot.slane %v1417, 4
      %v1419 = vmax.f32 %v1417, %v1418
      %v1420 = vrot.slane %v1419, 2
      %v1421 = vmax.f32 %v1419, %v1420
      %v1422 = vrot.slane %v1421, 1
      %v1423 = vmax.f32 %v1421, %v1422
      %v1424 = vsub.f32 %v1261, %v1423
      %v1425 = vsub.f32 %v1264, %v1423
      %v1426 = vsub.f32 %v1269, %v1423
      %v1427 = vsub.f32 %v1272, %v1423
      %v1428 = vsub.f32 %v1277, %v1423
      %v1429 = vsub.f32 %v1280, %v1423
      %v1430 = vsub.f32 %v1285, %v1423
      %v1431 = vsub.f32 %v1288, %v1423
      %v1432 = vsub.f32 %v1293, %v1423
      %v1433 = vsub.f32 %v1296, %v1423
      %v1434 = vsub.f32 %v1301, %v1423
      %v1435 = vsub.f32 %v1304, %v1423
      %v1436 = vsub.f32 %v1309, %v1423
      %v1437 = vsub.f32 %v1312, %v1423
      %v1438 = vsub.f32 %v1317, %v1423
      %v1439 = vsub.f32 %v1320, %v1423
      %v1440 = vsub.f32 %v1325, %v1423
      %v1441 = vsub.f32 %v1328, %v1423
      %v1442 = vsub.f32 %v1333, %v1423
      %v1443 = vsub.f32 %v1336, %v1423
      %v1444 = vsub.f32 %v1341, %v1423
      %v1445 = vsub.f32 %v1344, %v1423
      %v1446 = vsub.f32 %v1349, %v1423
      %v1447 = vsub.f32 %v1352, %v1423
      %v1448 = vsub.f32 %v1357, %v1423
      %v1449 = vsub.f32 %v1360, %v1423
      %v1450 = vsub.f32 %v1365, %v1423
      %v1451 = vsub.f32 %v1368, %v1423
      %v1452 = vsub.f32 %v1373, %v1423
      %v1453 = vsub.f32 %v1376, %v1423
      %v1454 = vsub.f32 %v1381, %v1423
      %v1455 = vsub.f32 %v1384, %v1423
      %v1456 = vmul.f32 %v1424, 1.442695
      %v1457 = vpow.pop %v1456
      %v1458 = vmul.f32 %v1425, 1.442695
      %v1459 = vpow.pop %v1458
      %v1460 = vmul.f32 %v1426, 1.442695
      %v1461 = vpow.pop %v1460
      %v1462 = vmul.f32 %v1427, 1.442695
      %v1463 = vpow.pop %v1462
      %v1464 = vmul.f32 %v1428, 1.442695
      %v1465 = vpow.pop %v1464
      %v1466 = vmul.f32 %v1429, 1.442695
      %v1467 = vpow.pop %v1466
      %v1468 = vmul.f32 %v1430, 1.442695
      %v1469 = vpow.pop %v1468
      %v1470 = vmul.f32 %v1431, 1.442695
      %v1471 = vpow.pop %v1470
      %v1472 = vmul.f32 %v1432, 1.442695
      %v1473 = vpow.pop %v1472
      %v1474 = vmul.f32 %v1433, 1.442695
      %v1475 = vpow.pop %v1474
      %v1476 = vmul.f32 %v1434, 1.442695
      %v1477 = vpow.pop %v1476
      %v1478 = vmul.f32 %v1435, 1.442695
      %v1479 = vpow.pop %v1478
      %v1480 = vmul.f32 %v1436, 1.442695
      %v1481 = vpow.pop %v1480
      %v1482 = vmul.f32 %v1437, 1.442695
      %v1483 = vpow.pop %v1482
      %v1484 = vmul.f32 %v1438, 1.442695
      %v1485 = vpow.pop %v1484
      %v1486 = vmul.f32 %v1439, 1.442695
      %v1487 = vpow.pop %v1486
      %v1488 = vmul.f32 %v1440, 1.442695
      %v1489 = vpow.pop %v1488
      %v1490 = vmul.f32 %v1441, 1.442695
      %v1491 = vpow.pop %v1490
      %v1492 = vmul.f32 %v1442, 1.442695
      %v1493 = vpow.pop %v1492
      %v1494 = vmul.f32 %v1443, 1.442695
      %v1495 = vpow.pop %v1494
      %v1496 = vmul.f32 %v1444, 1.442695
      %v1497 = vpow.pop %v1496
      %v1498 = vmul.f32 %v1445, 1.442695
      %v1499 = vpow.pop %v1498
      %v1500 = vmul.f32 %v1446, 1.442695
      %v1501 = vpow.pop %v1500
      %v1502 = vmul.f32 %v1447, 1.442695
      %v1503 = vpow.pop %v1502
      %v1504 = vmul.f32 %v1448, 1.442695
      %v1505 = vpow.pop %v1504
      %v1506 = vmul.f32 %v1449, 1.442695
      %v1507 = vpow.pop %v1506
      %v1508 = vmul.f32 %v1450, 1.442695
      %v1509 = vpow.pop %v1508
      %v1510 = vmul.f32 %v1451, 1.442695
      %v1511 = vpow.pop %v1510
      %v1512 = vmul.f32 %v1452, 1.442695
      %v1513 = vpow.pop %v1512
      %v1514 = vmul.f32 %v1453, 1.442695
      %v1515 = vpow.pop %v1514
      %v1516 = vmul.f32 %v1454, 1.442695
      %v1517 = vpow.pop %v1516
      %v1518 = vmul.f32 %v1455, 1.442695
      %v1519 = vpow.pop %v1518
      %v1520 = vadd.f32 %v1457, %v1459
      %v1521 = vadd.f32 %v1520, %v1461
      %v1522 = vadd.f32 %v1521, %v1463
      %v1523 = vadd.f32 %v1522, %v1465
      %v1524 = vadd.f32 %v1523, %v1467
      %v1525 = vadd.f32 %v1524, %v1469
      %v1526 = vadd.f32 %v1525, %v1471
      %v1527 = vadd.f32 %v1526, %v1473
      %v1528 = vadd.f32 %v1527, %v1475
      %v1529 = vadd.f32 %v1528, %v1477
      %v1530 = vadd.f32 %v1529, %v1479
      %v1531 = vadd.f32 %v1530, %v1481
      %v1532 = vadd.f32 %v1531, %v1483
      %v1533 = vadd.f32 %v1532, %v1485
      %v1534 = vadd.f32 %v1533, %v1487
      %v1535 = vadd.f32 %v1534, %v1489
      %v1536 = vadd.f32 %v1535, %v1491
      %v1537 = vadd.f32 %v1536, %v1493
      %v1538 = vadd.f32 %v1537, %v1495
      %v1539 = vadd.f32 %v1538, %v1497
      %v1540 = vadd.f32 %v1539, %v1499
      %v1541 = vadd.f32 %v1540, %v1501
      %v1542 = vadd.f32 %v1541, %v1503
      %v1543 = vadd.f32 %v1542, %v1505
      %v1544 = vadd.f32 %v1543, %v1507
      %v1545 = vadd.f32 %v1544, %v1509
      %v1546 = vadd.f32 %v1545, %v1511
      %v1547 = vadd.f32 %v1546, %v1513
      %v1548 = vadd.f32 %v1547, %v1515
      %v1549 = vadd.f32 %v1548, %v1517
      %v1550 = vadd.f32 %v1549, %v1519
      %v1551 = vrot.slane %v1550, 4
      %v1552 = vadd.f32 %v1550, %v1551
      %v1553 = vrot.slane %v1552, 2
      %v1554 = vadd.f32 %v1552, %v1553
      %v1555 = vrot.slane %v1554, 1
      %v1556 = vadd.f32 %v1554, %v1555
      %v1557 = vpack.c.bf16 %v1459, %v1457
      %v1558 = vpack.c.bf16 %v1463, %v1461
      %v1559 = vpack.c.bf16 %v1467, %v1465
      %v1560 = vpack.c.bf16 %v1471, %v1469
      %v1561 = vpack.c.bf16 %v1475, %v1473
      %v1562 = vpack.c.bf16 %v1479, %v1477
      %v1563 = vpack.c.bf16 %v1483, %v1481
      %v1564 = vpack.c.bf16 %v1487, %v1485
      %v1565 = vpack.c.bf16 %v1491, %v1489
      %v1566 = vpack.c.bf16 %v1495, %v1493
      %v1567 = vpack.c.bf16 %v1499, %v1497
      %v1568 = vpack.c.bf16 %v1503, %v1501
      %v1569 = vpack.c.bf16 %v1507, %v1505
      %v1570 = vpack.c.bf16 %v1511, %v1509
      %v1571 = vpack.c.bf16 %v1515, %v1513
      %v1572 = vpack.c.bf16 %v1519, %v1517
      %1573 = vmatprep.subr.bf16.mxu0 0
      %1574 = vmatpush1.bf16.msra.mxu0 %v1557
      %1575 = vmatprep.subr.bf16.mxu0 0
      %1576 = vmatpush1.bf16.msra.mxu0 %v1558
      %1577 = vmatprep.subr.bf16.mxu0 0
      %1578 = vmatpush1.bf16.msra.mxu0 %v1559
      %1579 = vmatprep.subr.bf16.mxu0 0
      %1580 = vmatpush1.bf16.msra.mxu0 %v1560
      %1581 = vmatprep.subr.bf16.mxu0 0
      %1582 = vmatpush1.bf16.msra.mxu0 %v1561
      %1583 = vmatprep.subr.bf16.mxu0 0
      %1584 = vmatpush1.bf16.msra.mxu0 %v1562
      %1585 = vmatprep.subr.bf16.mxu0 0
      %1586 = vmatpush1.bf16.msra.mxu0 %v1563
      %1587 = vmatprep.subr.bf16.mxu0 0
      %1588 = vmatpush1.bf16.msra.mxu0 %v1564
      %1589 = vmatprep.subr.bf16.mxu0 0
      %1590 = vmatpush1.bf16.msra.mxu0 %v1565
      %1591 = vmatprep.subr.bf16.mxu0 0
      %1592 = vmatpush1.bf16.msra.mxu0 %v1566
      %1593 = vmatprep.subr.bf16.mxu0 0
      %1594 = vmatpush1.bf16.msra.mxu0 %v1567
      %1595 = vmatprep.subr.bf16.mxu0 0
      %1596 = vmatpush1.bf16.msra.mxu0 %v1568
      %1597 = vmatprep.subr.bf16.mxu0 0
      %1598 = vmatpush1.bf16.msra.mxu0 %v1569
      %1599 = vmatprep.subr.bf16.mxu0 0
      %1600 = vmatpush1.bf16.msra.mxu0 %v1570
      %1601 = vmatprep.subr.bf16.mxu0 0
      %1602 = vmatpush1.bf16.msra.mxu0 %v1571
      %1603 = vmatprep.subr.bf16.mxu0 0
      %1604 = vmatpush1.bf16.msra.mxu0 %v1572
      %1605 = vmatprep.mubr.bf16.mxu0 %v651
      %1606 = vmatmul.mubr.bf16.gmra.mrb[0].mxu0 %v650
      %v1607 = vpop.f32.mrb[0].mxu0
      %v1608 = vadd.f32 0.0, %v1607
      %v1609 = vpop.f32.mrb[0].mxu0
      %v1610 = vpop.f32.mrb[0].mxu0
      %v1611 = vadd.f32 0.0, %v1610
      %v1612 = vpop.f32.mrb[0].mxu0
      %1613 = vmatprep.mubr.bf16.mxu0 %v653
      %1614 = vmatmul.mubr.bf16.gmra.mrb[0].mxu0 %v652
      %v1615 = vpop.f32.mrb[0].mxu0
      %v1616 = vadd.f32 0.0, %v1615
      %v1617 = vpop.f32.mrb[0].mxu0
      %v1618 = vpop.f32.mrb[0].mxu0
      %v1619 = vadd.f32 0.0, %v1618
      %v1620 = vpop.f32.mrb[0].mxu0
      %1621 = vdwg.mxu0
      %v1622 = vrcp.pop %v1556
      %v1623 = vmul.f32 %v1608, %v1622
      %v1624 = vmul.f32 %v1611, %v1622
      %v1625 = vmul.f32 %v1616, %v1622
      %v1626 = vmul.f32 %v1619, %v1622
      %v1627 = vpack.c.bf16 %v1624, %v1623
      %v1628 = vpack.c.bf16 %v1626, %v1625
      %1629 = vmatprep.subr.bf16.mxu0 0
      %1630 = vmatpush1.bf16.msra.mxu0 %v1627
      %1631 = vmatprep.subr.bf16.mxu0 0
      %1632 = vmatpush1.bf16.msra.mxu0 %v1628
      %1633 = vmatprep.subr.bf16.mxu0 0
      %1634 = vmatpush1.bf16.msra.mxu0 0
      %1635 = vmatprep.subr.bf16.mxu0 0
      %1636 = vmatpush1.bf16.msra.mxu0 0
      %1637 = vmatprep.subr.bf16.mxu0 0
      %1638 = vmatpush1.bf16.msra.mxu0 0
      %1639 = vmatprep.subr.bf16.mxu0 0
      %1640 = vmatpush1.bf16.msra.mxu0 0
      %1641 = vmatprep.subr.bf16.mxu0 0
      %1642 = vmatpush1.bf16.msra.mxu0 0
      %1643 = vmatprep.subr.bf16.mxu0 0
      %1644 = vmatpush1.bf16.msra.mxu0 0
      %1645 = vmatprep.subr.bf16.mxu0 0
      %1646 = vmatpush1.bf16.msra.mxu0 0
      %1647 = vmatprep.subr.bf16.mxu0 0
      %1648 = vmatpush1.bf16.msra.mxu0 0
      %1649 = vmatprep.subr.bf16.mxu0 0
      %1650 = vmatpush1.bf16.msra.mxu0 0
      %1651 = vmatprep.subr.bf16.mxu0 0
      %1652 = vmatpush1.bf16.msra.mxu0 0
      %1653 = vmatprep.subr.bf16.mxu0 0
      %1654 = vmatpush1.bf16.msra.mxu0 0
      %1655 = vmatprep.subr.bf16.mxu0 0
      %1656 = vmatpush1.bf16.msra.mxu0 0
      %1657 = vmatprep.subr.bf16.mxu0 0
      %1658 = vmatpush1.bf16.msra.mxu0 0
      %1659 = vmatprep.subr.bf16.mxu0 0
      %1660 = vmatpush1.bf16.msra.mxu0 0
      %1661 = vmatprep.mubr.bf16.mxu0 0
      %1662 = vmatmul.mubr.bf16.gmra.mrb[0].mxu0 %v1168
      %v1663 = vpop.f32.mrb[0].mxu0
      %v1664 = vadd.f32 %v1140, %v1663
      %v1665 = vpop.f32.mrb[0].mxu0
      %v1666 = vpop.f32.mrb[0].mxu0
      %v1667 = vadd.f32 %v1145, %v1666
      %v1668 = vpop.f32.mrb[0].mxu0
      %1669 = vmatprep.mubr.bf16.mxu0 0
      %1670 = vmatmul.mubr.bf16.gmra.mrb[0].mxu0 %v1171
      %v1671 = vpop.f32.mrb[0].mxu0
      %v1672 = vadd.f32 %v1150, %v1671
      %v1673 = vpop.f32.mrb[0].mxu0
      %v1674 = vpop.f32.mrb[0].mxu0
      %v1675 = vadd.f32 %v1155, %v1674
      %v1676 = vpop.f32.mrb[0].mxu0
      %1677 = vdwg.mxu0
      %1678 = vst [vmem:[%s325 + $0x8] sm:$0xff] %v1664
      %1679 = vst [vmem:[%s325 + $0x18] sm:$0xff] %v1667
      %1680 = vst [vmem:[%s325 + $0x28] sm:$0xff] %v1672
      %1681 = vst [vmem:[%s325 + $0x38] sm:$0xff] %v1675
      %p1682 = scmp.lt.s32.totalorder %s19, 1
      %s1683 = scalar_select %p1682, %s19, 1
      %s1684 = smul.addr %s1683, 8
      %s1685 = smul.addr %s1684, 8
      %s1686 = scalar_lea.vmem %s8, %s1685
      // Predicated region
      $region53: #{cross_attention_pallas.1} parent=51 // pred_check
        %p1687 = pneg %p215
      $region54: #{cross_attention_pallas.1} parent=51 // pred_check_branch
        %1689 = sbr.rel (%p1687) target = $region56
      $region55: #{cross_attention_pallas.1} parent=51 // pred_region
        _
      $region56: #{cross_attention_pallas.1} parent=51 // pred_fallthru
        _
    $region52: #{cross_attention_pallas.1} parent=5 // pred_fallthru
      _
    %p1690 = scmp.le.s32.totalorder 2, %s14
    // Predicated region
    $region57: #{cross_attention_pallas.1} parent=5 // pred_check
      %p1691 = pneg %p1690
    $region58: #{cross_attention_pallas.1} parent=5 // pred_check_branch
      %1693 = sbr.rel (%p1691) target = $region60
    $region59: #{cross_attention_pallas.1} parent=5 // pred_region
      %s1694 = ssub.s32 %s14, 2
      // Predicated region
      $region61: #{cross_attention_pallas.1} parent=59 // pred_check
        %p1695 = pneg %p221
      $region62: #{cross_attention_pallas.1} parent=59 // pred_check_branch
        %1697 = sbr.rel (%p1695) target = $region64
      $region63: #{cross_attention_pallas.1} parent=59 // pred_region
        %p1698 = scmp.lt.s32.totalorder %s20, 1
        %s1699 = scalar_select %p1698, %s20, 1
        %s1700 = smul.addr %s1699, 8
        %s1701 = smul.addr %s1700, 8
        %s1702 = scalar_lea.vmem %s8, %s1701
      $region64: #{cross_attention_pallas.1} parent=59 // pred_fallthru
        _
    $region60: #{cross_attention_pallas.1} parent=5 // pred_fallthru
      _
  $region6: #{cross_attention_pallas.1} parent=0 // loop_footer
    %s18 = sadd.s32 1, %s14
  $region7: #{cross_attention_pallas.1} parent=0 // loop_footer_branch
    %13 = sbr.rel target = $region3
  $region8: #{cross_attention_pallas.1} parent=0 // loop_exit
    _

</llo_original>
